<compile_context>
chip_gen: v5e
topology: v5e:2x2
jax: 0.10.0
libtpu: 0.0.40
codegen_flags: <defaults>
</compile_context>

<pallas_src>
import math
import functools

import jax
import jax.numpy as jnp
from jax.experimental import pallas as pl
from jax.experimental.pallas import tpu as pltpu


# ----------------------------- in-kernel helpers -----------------------------

def _layer_norm(x, gamma, beta, eps=1e-12):
    # TF-style LayerNorm (epsilon inside the sqrt); rsqrt runs on the EUP slot.
    u = jnp.mean(x, axis=-1, keepdims=True)
    xc = x - u
    s = jnp.mean(xc * xc, axis=-1, keepdims=True)
    return gamma * (xc * jax.lax.rsqrt(s + eps)) + beta


def _gelu(x):
    # erf-based GELU, matching the reference module exactly.
    return x * 0.5 * (1.0 + jax.lax.erf(x / math.sqrt(2.0)))


# --------------------------------- kernel ------------------------------------

def encoder_stack_kernel(emb_ref, neg_ref, eg_ref, eb_ref,
                         wqkv_ref, bqkv_ref, wo_ref, bo_ref, g1_ref, n1_ref,
                         w1_ref, f1_ref, w2_ref, f2_ref, g2_ref, n2_ref,
                         o_ref, h_ref, *, n_heads, bt, approx_softmax):
    """One (batch tile, layer) grid step of the fused encoder stack.

    Activations are (Bt*S, D) 2-D slabs.  The VMEM scratch carries them across
    the layer axis, so HBM sees exactly one activation read (l == 0, the
    embedding sum) and one write (l == L-1) per batch tile.
    """
    l = pl.program_id(1)

    # Layer 0: embedding LayerNorm on the precomputed tok+pos+seg sum.
    @pl.when(l == 0)
    def _():
        h_ref[...] = _layer_norm(emb_ref[...], eg_ref[...], eb_ref[...])

    x = h_ref[...]                                    # (N, D) f32, N = Bt*S
    N, D = x.shape
    S = N // bt
    H = n_heads
    Wd = D // H
    mxu = wqkv_ref.dtype                              # bf16 (or f32)

    # --- Fused Q/K/V projection: one (N, D) x (D, 3D) MXU matmul -------------
    xc = x.astype(mxu)
    qkv = jnp.dot(xc, wqkv_ref[...],
                  preferred_element_type=jnp.float32) + bqkv_ref[...]
    q = qkv[:, :D] * (1.0 / math.sqrt(Wd))            # fold 1/sqrt(W) into q
    k = qkv[:, D:2 * D]
    v = qkv[:, 2 * D:]

    # --- Multi-head attention, one batch row at a time ------------------------
    # Per-row processing bounds the live f32 score tensor at (H, S, S) instead
    # of (Bt*H, S, S).  Head split/merge uses static lane slices + stack/concat
    # (known-good Mosaic lowering at these shapes).
    negs = neg_ref[...]                               # (Bt, 1, S) f32 add-mask
    attn_rows = []
    for b in range(bt):
        rows = slice(b * S, (b + 1) * S)

        def hsplit(t, _rows=rows):
            return jnp.stack([t[_rows, h * Wd:(h + 1) * Wd] for h in range(H)],
                             axis=0).astype(mxu)      # (H, S, Wd)

        qh, kh, vh = hsplit(q), hsplit(k), hsplit(v)

        sc = jnp.einsum('hqw,hkw->hqk', qh, kh,
                        preferred_element_type=jnp.float32)     # (H, S, S)
        sc = sc + negs[b]                             # (1, S) key mask bcast
        sc = sc - jnp.max(sc, axis=-1, keepdims=True)
        p = jnp.exp(sc)
        den = jnp.sum(p, axis=-1, keepdims=True)
        if approx_softmax:
            p = p * pl.reciprocal(den, approx=True)   # EUP slot (bf16 path)
        else:
            p = p / den                               # exact (f32 validation)
        ctx = jnp.einsum('hqk,hkw->hqw', p.astype(mxu), vh,
                         preferred_element_type=jnp.float32)    # (H, S, Wd)
        attn_rows.append(jnp.concatenate([ctx[h] for h in range(H)], axis=-1))

    attn = attn_rows[0] if bt == 1 else jnp.concatenate(attn_rows, axis=0)

    # --- Output projection + residual + LayerNorm -----------------------------
    proj = jnp.dot(attn.astype(mxu), wo_ref[...],
                   preferred_element_type=jnp.float32) + bo_ref[...]
    h1 = _layer_norm(x + proj, g1_ref[...], n1_ref[...])

    # --- Position-wise FFN + residual + LayerNorm ------------------------------
    ff = jnp.dot(h1.astype(mxu), w1_ref[...],
                 preferred_element_type=jnp.float32) + f1_ref[...]
    ff = _gelu(ff)
    ff = jnp.dot(ff.astype(mxu), w2_ref[...],
                 preferred_element_type=jnp.float32) + f2_ref[...]
    h2 = _layer_norm(h1 + ff, g2_ref[...], n2_ref[...])

    h_ref[...] = h2                                   # VMEM carry across layers

    @pl.when(l == pl.num_programs(1) - 1)
    def _():
        o_ref[...] = h2.astype(o_ref.dtype)


# --------------------------------- wrappers -----------------------------------

_LAYER_PARAM_ORDER = ("wqkv", "bqkv", "wo", "bo", "g1", "bn1",
                      "w1", "bf1", "w2", "bf2", "g2", "bn2")
_MXU_WEIGHT_KEYS = frozenset({"wqkv", "wo", "w1", "w2"})


def _default_vmem_limit():
    # Chip-aware scoped-VMEM limit: ~56 MiB on v7x (64 MiB physical per TC),
    # 100 MiB on v5e/v6e (128 MiB physical).  Falls back to 64 MiB (valid on
    # all generations) if the query is unavailable.
    try:
        cap = pltpu.get_tpu_info().vmem_capacity_bytes
        return int(min(cap - 8 * 1024 * 1024, 100 * 1024 * 1024))
    except Exception:
        return 64 * 1024 * 1024


def _stack_layer_params(layers, mxu_dtype):
    """Stack per-layer params along a leading L axis; fuse QKV; weights -> bf16."""
    stacked = {
        "wqkv": jnp.stack([jnp.concatenate([lp["wq"], lp["wk"], lp["wv"]], axis=-1)
                           for lp in layers], axis=0).astype(mxu_dtype),
        "bqkv": jnp.stack([jnp.concatenate([lp["bq"], lp["bk"], lp["bv"]], axis=-1)
                           for lp in layers], axis=0),
    }
    for key in ("wo", "bo", "g1", "bn1", "w1", "bf1", "w2", "bf2", "g2", "bn2"):
        arr = jnp.stack([lp[key] for lp in layers], axis=0)
        if key in _MXU_WEIGHT_KEYS:
            arr = arr.astype(mxu_dtype)
        stacked[key] = arr
    return stacked


def run_encoder_stack(emb, neg, emb_gamma, emb_beta, stacked, n_heads, *,
                      batch_tile=4, approx_softmax=True, vmem_limit_bytes=None):
    """All L encoder layers (plus embedding LN) in ONE pallas_call.

    grid = (B // Bt, L); per-layer weights are selected with an (l, ...) index
    map so Pallas prefetches layer l+1 weights under layer l compute, amortized
    over the Bt batch rows of the tile.
    """
    BS, D = emb.shape
    B = neg.shape[0]
    S = BS // B
    L = stacked["wqkv"].shape[0]
    D_FF = stacked["w1"].shape[-1]
    H = n_heads

    bt = max(1, min(batch_tile, B))
    while B % bt:                      # largest divisor of B not above batch_tile
        bt -= 1

    if vmem_limit_bytes is None:
        vmem_limit_bytes = _default_vmem_limit()

    act_spec = pl.BlockSpec((bt * S, D), lambda i, l: (i, 0))
    out_spec = pl.BlockSpec((bt * S, D), lambda i, l: (i, 0))
    mask_spec = pl.BlockSpec((bt, 1, S), lambda i, l: (i, 0, 0))
    vec_spec = pl.BlockSpec((1, D), lambda i, l: (0, 0))

    def layer_spec(arr):
        tail = arr.shape[1:]
        zeros = (0,) * len(tail)
        return pl.BlockSpec((pl.Squeezed(),) + tail,
                            lambda i, l, _z=zeros: (l,) + _z)

    params_list = [stacked[key] for key in _LAYER_PARAM_ORDER]
    in_specs = ([act_spec, mask_spec, vec_spec, vec_spec]
                + [layer_spec(p) for p in params_list])

    # Advisory cost estimate (attention = 4*S*S*D; weights re-read per batch tile).
    n_tok = BS
    flops = L * (2 * n_tok * D * (4 * D + 2 * D_FF) + 4 * B * S * S * D)
    transcendentals = L * (B * H * S * S + n_tok * D_FF + B * H * S + 2 * n_tok)
    weight_bytes = sum(int(p.size) * p.dtype.itemsize for p in params_list)
    bytes_accessed = weight_bytes * (B // bt) + (2 * n_tok * D + B * S) * 4
    cost = pl.CostEstimate(flops=int(flops),
                           transcendentals=int(transcendentals),
                           bytes_accessed=int(bytes_accessed))

    kernel = functools.partial(encoder_stack_kernel, n_heads=n_heads, bt=bt,
                               approx_softmax=approx_softmax)
    return pl.pallas_call(
        kernel,
        out_shape=jax.ShapeDtypeStruct((BS, D), jnp.float32),
        grid=(B // bt, L),
        in_specs=in_specs,
        out_specs=out_spec,
        scratch_shapes=[pltpu.VMEM((bt * S, D), jnp.float32)],   # activation carry
        compiler_params=pltpu.CompilerParams(
            dimension_semantics=("parallel", "arbitrary"),
            vmem_limit_bytes=vmem_limit_bytes),
        cost_estimate=cost,
    )(emb, neg, emb_gamma, emb_beta, *params_list)


def encoder_stack_forward(input_ids, segment_ids, input_mask, params, n_heads,
                          mxu_dtype=jnp.bfloat16, batch_tile=4):
    B, S = input_ids.shape
    D = params["tok_embed"].shape[1]
    # Embedding gathers + sum stay in XLA glue (one fusion, one HBM write); the
    # embedding LayerNorm runs inside the stack kernel under l == 0.
    tok_e = jnp.take(params["tok_embed"], input_ids, axis=0)             # (B,S,D)
    pos_e = jnp.take(params["pos_embed"], jnp.arange(S), axis=0)[None]   # (1,S,D)
    seg_e = jnp.take(params["seg_embed"], segment_ids, axis=0)           # (B,S,D)
    emb = (tok_e + pos_e + seg_e).reshape(B * S, D)

    # Additive attention mask, computed once for the whole stack.  Dropout
    # layers are identity (inference semantics).
    neg = (-10000.0 * (1.0 - input_mask.astype(jnp.float32)))[:, None, :]  # (B,1,S)

    stacked = _stack_layer_params(params["layers"], mxu_dtype)
    out = run_encoder_stack(emb, neg, params["emb_gamma"], params["emb_beta"],
                            stacked, n_heads, batch_tile=batch_tile,
                            approx_softmax=(mxu_dtype != jnp.float32))
    return out.reshape(B, S, D)


# ----------------------------- pure-JAX reference -----------------------------

def _ref_layer_norm(x, gamma, beta, eps=1e-12):
    u = jnp.mean(x, axis=-1, keepdims=True)
    s = jnp.mean((x - u) ** 2, axis=-1, keepdims=True)
    return gamma * ((x - u) / jnp.sqrt(s + eps)) + beta


def ref_forward(input_ids, segment_ids, input_mask, params, n_heads):
    B, S = input_ids.shape
    D = params["tok_embed"].shape[1]
    Wd = D // n_heads
    tok_e = params["tok_embed"][input_ids]
    pos_e = params["pos_embed"][jnp.arange(S)][None]
    seg_e = params["seg_embed"][segment_ids]
    h = _ref_layer_norm(tok_e + pos_e + seg_e, params["emb_gamma"], params["emb_beta"])
    mask = input_mask.astype(jnp.float32)[:, None, None, :]
    for lp in params["layers"]:
        q = h @ lp["wq"] + lp["bq"]
        k = h @ lp["wk"] + lp["bk"]
        v = h @ lp["wv"] + lp["bv"]
        q = q.reshape(B, S, n_heads, Wd).transpose(0, 2, 1, 3)
        k = k.reshape(B, S, n_heads, Wd).transpose(0, 2, 1, 3)
        v = v.reshape(B, S, n_heads, Wd).transpose(0, 2, 1, 3)
        sc = (q @ k.transpose(0, 1, 3, 2)) / math.sqrt(Wd)
        sc = sc - 10000.0 * (1.0 - mask)
        p = jax.nn.softmax(sc, axis=-1)
        a = (p @ v).transpose(0, 2, 1, 3).reshape(B, S, D)
        proj = a @ lp["wo"] + lp["bo"]
        h1 = _ref_layer_norm(h + proj, lp["g1"], lp["bn1"])
        ff = h1 @ lp["w1"] + lp["bf1"]
        ff = ff * 0.5 * (1.0 + jax.lax.erf(ff / math.sqrt(2.0)))
        ff = ff @ lp["w2"] + lp["bf2"]
        h = _ref_layer_norm(h1 + ff, lp["g2"], lp["bn2"])
    return h


# ------------------------------------ main ------------------------------------

if __name__ == "__main__":
    # Small BertConfig-consistent shapes.
    B, S = 2, 8
    VOCAB, D, N_LAYERS, N_HEADS, D_FF = 100, 32, 2, 4, 128
    MAX_LEN, N_SEG = 16, 2

    key = jax.random.PRNGKey(0)

    def nrm(k, shape, scale=0.02):
        return scale * jax.random.normal(k, shape, jnp.float32)

    keys = iter(jax.random.split(key, 64))

    params = {
        "tok_embed": nrm(next(keys), (VOCAB, D)),
        "pos_embed": nrm(next(keys), (MAX_LEN, D)),
        "seg_embed": nrm(next(keys), (N_SEG, D)),
        "emb_gamma": jnp.ones((1, D), jnp.float32),
        "emb_beta": jnp.zeros((1, D), jnp.float32),
        "layers": [],
    }
    for _ in range(N_LAYERS):
        lp = {
            "wq": nrm(next(keys), (D, D)), "bq": nrm(next(keys), (1, D)),
            "wk": nrm(next(keys), (D, D)), "bk": nrm(next(keys), (1, D)),
            "wv": nrm(next(keys), (D, D)), "bv": nrm(next(keys), (1, D)),
            "wo": nrm(next(keys), (D, D)), "bo": nrm(next(keys), (1, D)),
            "g1": jnp.ones((1, D), jnp.float32), "bn1": jnp.zeros((1, D), jnp.float32),
            "w1": nrm(next(keys), (D, D_FF)), "bf1": nrm(next(keys), (1, D_FF)),
            "w2": nrm(next(keys), (D_FF, D)), "bf2": nrm(next(keys), (1, D)),
            "g2": jnp.ones((1, D), jnp.float32), "bn2": jnp.zeros((1, D), jnp.float32),
        }
        params["layers"].append(lp)

    kin = jax.random.split(jax.random.PRNGKey(1), 3)
    input_ids = jax.random.randint(kin[0], (B, S), 0, VOCAB, dtype=jnp.int32)
    segment_ids = jax.random.randint(kin[1], (B, S), 0, N_SEG, dtype=jnp.int32)
    # Mask: first batch fully valid, second batch has last two positions padded.
    input_mask = jnp.array([[1] * S, [1] * (S - 2) + [0, 0]], dtype=jnp.int32)

    ref = ref_forward(input_ids, segment_ids, input_mask, params, N_HEADS)

    # f32 MXU path (exact softmax division): should match the f32 reference.
    fwd_f32 = jax.jit(functools.partial(
        encoder_stack_forward, n_heads=N_HEADS, mxu_dtype=jnp.float32))
    out_f32 = jax.block_until_ready(fwd_f32(input_ids, segment_ids, input_mask, params))
    assert out_f32.shape == (B, S, D)
    assert jnp.allclose(out_f32, ref, atol=2e-3, rtol=2e-3), (
        f"f32 max abs diff {jnp.max(jnp.abs(out_f32 - ref))}")

    # bf16-weight MXU path (recommended perf config): looser tolerance vs the
    # f32 reference (MXU inputs rounded to bf16; stats / accumulation stay f32).
    fwd_bf16 = jax.jit(functools.partial(
        encoder_stack_forward, n_heads=N_HEADS, mxu_dtype=jnp.bfloat16))
    out_bf16 = jax.block_until_ready(fwd_bf16(input_ids, segment_ids, input_mask, params))
    assert out_bf16.shape == (B, S, D)
    assert jnp.allclose(out_bf16, ref, atol=2e-2, rtol=2e-2), (
        f"bf16 max abs diff {jnp.max(jnp.abs(out_bf16 - ref))}")

    print("KERNEL_OK")
</pallas_src>

<mosaic_0001>
module attributes {stable_mosaic.version = 11 : i64} {
  func.func @encoder_stack_kernel(%arg0: i32, %arg1: i32, %arg2: memref<16x32xf32, #tpu.memory_space<vmem>>, %arg3: memref<2x1x8xf32, #tpu.memory_space<vmem>>, %arg4: memref<1x32xf32, #tpu.memory_space<vmem>>, %arg5: memref<1x32xf32, #tpu.memory_space<vmem>>, %arg6: memref<1x32x96xf32, #tpu.memory_space<vmem>>, %arg7: memref<1x1x96xf32, #tpu.memory_space<vmem>>, %arg8: memref<1x32x32xf32, #tpu.memory_space<vmem>>, %arg9: memref<1x1x32xf32, #tpu.memory_space<vmem>>, %arg10: memref<1x1x32xf32, #tpu.memory_space<vmem>>, %arg11: memref<1x1x32xf32, #tpu.memory_space<vmem>>, %arg12: memref<1x32x128xf32, #tpu.memory_space<vmem>>, %arg13: memref<1x1x128xf32, #tpu.memory_space<vmem>>, %arg14: memref<1x128x32xf32, #tpu.memory_space<vmem>>, %arg15: memref<1x1x32xf32, #tpu.memory_space<vmem>>, %arg16: memref<1x1x32xf32, #tpu.memory_space<vmem>>, %arg17: memref<1x1x32xf32, #tpu.memory_space<vmem>>, %arg18: memref<16x32xf32, #tpu.memory_space<vmem>>, %arg19: memref<16x32xf32, #tpu.memory_space<vmem>>) attributes {dimension_semantics = [#tpu.dimension_semantics<parallel>, #tpu.dimension_semantics<arbitrary>], iteration_bounds = array<i64: 1, 2>, scalar_prefetch = 0 : i64, scratch_operands = 1 : i64, tpu.core_type = #tpu.core_type<tc>, window_params = [{transform_indices = @transform_0, window_bounds = array<i64: 16, 32>}, {transform_indices = @transform_1, window_bounds = array<i64: 2, 1, 8>}, {pipeline_mode = #tpu.pipeline_mode<synchronous>, transform_indices = @transform_2, window_bounds = array<i64: 1, 32>}, {pipeline_mode = #tpu.pipeline_mode<synchronous>, transform_indices = @transform_3, window_bounds = array<i64: 1, 32>}, {transform_indices = @transform_4, window_bounds = array<i64: 1, 32, 96>}, {transform_indices = @transform_5, window_bounds = array<i64: 1, 1, 96>}, {transform_indices = @transform_6, window_bounds = array<i64: 1, 32, 32>}, {transform_indices = @transform_7, window_bounds = array<i64: 1, 1, 32>}, {transform_indices = @transform_8, window_bounds = array<i64: 1, 1, 32>}, {transform_indices = @transform_9, window_bounds = array<i64: 1, 1, 32>}, {transform_indices = @transform_10, window_bounds = array<i64: 1, 32, 128>}, {transform_indices = @transform_11, window_bounds = array<i64: 1, 1, 128>}, {transform_indices = @transform_12, window_bounds = array<i64: 1, 128, 32>}, {transform_indices = @transform_13, window_bounds = array<i64: 1, 1, 32>}, {transform_indices = @transform_14, window_bounds = array<i64: 1, 1, 32>}, {transform_indices = @transform_15, window_bounds = array<i64: 1, 1, 32>}, {transform_indices = @transform_16, window_bounds = array<i64: 16, 32>}]} {
    %c0_i32 = arith.constant 0 : i32
    %0 = arith.cmpi eq, %arg1, %c0_i32 : i32
    %1 = arith.extui %0 : i1 to i32
    %c0_i32_0 = arith.constant 0 : i32
    %2 = arith.cmpi ne, %1, %c0_i32_0 : i32
    scf.if %2 {
      %c0_69 = arith.constant 0 : index
      %c0_70 = arith.constant 0 : index
      %205 = vector.load %arg2[%c0_69, %c0_70] : memref<16x32xf32, #tpu.memory_space<vmem>>, vector<16x32xf32>
      %c0_71 = arith.constant 0 : index
      %c0_72 = arith.constant 0 : index
      %206 = vector.load %arg4[%c0_71, %c0_72] : memref<1x32xf32, #tpu.memory_space<vmem>>, vector<1x32xf32>
      %c0_73 = arith.constant 0 : index
      %c0_74 = arith.constant 0 : index
      %207 = vector.load %arg5[%c0_73, %c0_74] : memref<1x32xf32, #tpu.memory_space<vmem>>, vector<1x32xf32>
      %cst_75 = arith.constant dense<0.000000e+00> : vector<16xf32>
      %208 = vector.multi_reduction <add>, %205, %cst_75 [1] : vector<16x32xf32> to vector<16xf32>
      %209 = vector.shape_cast %208 : vector<16xf32> to vector<16x1xf32>
      %cst_76 = arith.constant 3.200000e+01 : f32
      %210 = vector.broadcast %cst_76 : f32 to vector<16x1xf32>
      %211 = arith.divf %209, %210 : vector<16x1xf32>
      %212 = vector.broadcast %211 : vector<16x1xf32> to vector<16x32xf32>
      %213 = arith.subf %205, %212 : vector<16x32xf32>
      %214 = arith.mulf %213, %213 : vector<16x32xf32>
      %cst_77 = arith.constant dense<0.000000e+00> : vector<16xf32>
      %215 = vector.multi_reduction <add>, %214, %cst_77 [1] : vector<16x32xf32> to vector<16xf32>
      %216 = vector.shape_cast %215 : vector<16xf32> to vector<16x1xf32>
      %cst_78 = arith.constant 3.200000e+01 : f32
      %217 = vector.broadcast %cst_78 : f32 to vector<16x1xf32>
      %218 = arith.divf %216, %217 : vector<16x1xf32>
      %cst_79 = arith.constant 9.99999996E-13 : f32
      %219 = vector.broadcast %cst_79 : f32 to vector<16x1xf32>
      %220 = arith.addf %218, %219 : vector<16x1xf32>
      %221 = math.rsqrt %220 : vector<16x1xf32>
      %222 = vector.broadcast %221 : vector<16x1xf32> to vector<16x32xf32>
      %223 = arith.mulf %213, %222 : vector<16x32xf32>
      %224 = vector.broadcast %206 : vector<1x32xf32> to vector<16x32xf32>
      %225 = arith.mulf %224, %223 : vector<16x32xf32>
      %226 = vector.broadcast %207 : vector<1x32xf32> to vector<16x32xf32>
      %227 = arith.addf %225, %226 : vector<16x32xf32>
      %c0_80 = arith.constant 0 : index
      %c0_81 = arith.constant 0 : index
      %228 = vector.load %arg19[%c0_80, %c0_81] : memref<16x32xf32, #tpu.memory_space<vmem>>, vector<16x32xf32>
      tpu.vector_store %arg19[%c0_80, %c0_81], %227 {strides = array<i32>} : memref<16x32xf32, #tpu.memory_space<vmem>>, vector<16x32xf32>,
    } else {
    }
    %c0 = arith.constant 0 : index
    %c0_1 = arith.constant 0 : index
    %3 = vector.load %arg19[%c0, %c0_1] : memref<16x32xf32, #tpu.memory_space<vmem>>, vector<16x32xf32>
    %c0_2 = arith.constant 0 : index
    %c0_3 = arith.constant 0 : index
    %c0_4 = arith.constant 0 : index
    %4 = vector.load %arg6[%c0_2, %c0_3, %c0_4] : memref<1x32x96xf32, #tpu.memory_space<vmem>>, vector<1x32x96xf32>
    %5 = vector.shape_cast %4 : vector<1x32x96xf32> to vector<32x96xf32>
    %cst = arith.constant dense<0.000000e+00> : vector<16x96xf32>
    %6 = tpu.matmul %3, %5, %cst {dimension_numbers = #tpu.dot_dimension_numbers<[1], [0], [0], [1], [0, 0, 1, 1], [], []>} : vector<16x32xf32>, vector<32x96xf32>, vector<16x96xf32> -> vector<16x96xf32>
    %c0_5 = arith.constant 0 : index
    %c0_6 = arith.constant 0 : index
    %c0_7 = arith.constant 0 : index
    %7 = vector.load %arg7[%c0_5, %c0_6, %c0_7] : memref<1x1x96xf32, #tpu.memory_space<vmem>>, vector<1x1x96xf32>
    %8 = vector.shape_cast %7 : vector<1x1x96xf32> to vector<1x96xf32>
    %9 = vector.broadcast %8 : vector<1x96xf32> to vector<16x96xf32>
    %10 = arith.addf %6, %9 : vector<16x96xf32>
    %11 = vector.extract_strided_slice %10 {offsets = [0, 0], sizes = [16, 32], strides = [1, 1]} : vector<16x96xf32> to vector<16x32xf32>
    %cst_8 = arith.constant 0.353553385 : f32
    %12 = vector.broadcast %cst_8 : f32 to vector<16x32xf32>
    %13 = arith.mulf %11, %12 : vector<16x32xf32>
    %14 = vector.extract_strided_slice %10 {offsets = [0, 32], sizes = [16, 32], strides = [1, 1]} : vector<16x96xf32> to vector<16x32xf32>
    %15 = vector.extract_strided_slice %10 {offsets = [0, 64], sizes = [16, 32], strides = [1, 1]} : vector<16x96xf32> to vector<16x32xf32>
    %c0_9 = arith.constant 0 : index
    %c0_10 = arith.constant 0 : index
    %c0_11 = arith.constant 0 : index
    %16 = vector.load %arg3[%c0_9, %c0_10, %c0_11] : memref<2x1x8xf32, #tpu.memory_space<vmem>>, vector<2x1x8xf32>
    %17 = vector.extract_strided_slice %13 {offsets = [0, 0], sizes = [8, 8], strides = [1, 1]} : vector<16x32xf32> to vector<8x8xf32>
    %18 = vector.extract_strided_slice %13 {offsets = [0, 8], sizes = [8, 8], strides = [1, 1]} : vector<16x32xf32> to vector<8x8xf32>
    %19 = vector.extract_strided_slice %13 {offsets = [0, 16], sizes = [8, 8], strides = [1, 1]} : vector<16x32xf32> to vector<8x8xf32>
    %20 = vector.extract_strided_slice %13 {offsets = [0, 24], sizes = [8, 8], strides = [1, 1]} : vector<16x32xf32> to vector<8x8xf32>
    %21 = vector.shape_cast %17 : vector<8x8xf32> to vector<1x8x8xf32>
    %22 = vector.shape_cast %18 : vector<8x8xf32> to vector<1x8x8xf32>
    %23 = vector.shape_cast %19 : vector<8x8xf32> to vector<1x8x8xf32>
    %24 = vector.shape_cast %20 : vector<8x8xf32> to vector<1x8x8xf32>
    %25 = tpu.concatenate %21, %22, %23, %24 in 0 : vector<1x8x8xf32>, vector<1x8x8xf32>, vector<1x8x8xf32>, vector<1x8x8xf32> -> vector<4x8x8xf32>
    %26 = vector.extract_strided_slice %14 {offsets = [0, 0], sizes = [8, 8], strides = [1, 1]} : vector<16x32xf32> to vector<8x8xf32>
    %27 = vector.extract_strided_slice %14 {offsets = [0, 8], sizes = [8, 8], strides = [1, 1]} : vector<16x32xf32> to vector<8x8xf32>
    %28 = vector.extract_strided_slice %14 {offsets = [0, 16], sizes = [8, 8], strides = [1, 1]} : vector<16x32xf32> to vector<8x8xf32>
    %29 = vector.extract_strided_slice %14 {offsets = [0, 24], sizes = [8, 8], strides = [1, 1]} : vector<16x32xf32> to vector<8x8xf32>
    %30 = vector.shape_cast %26 : vector<8x8xf32> to vector<1x8x8xf32>
    %31 = vector.shape_cast %27 : vector<8x8xf32> to vector<1x8x8xf32>
    %32 = vector.shape_cast %28 : vector<8x8xf32> to vector<1x8x8xf32>
    %33 = vector.shape_cast %29 : vector<8x8xf32> to vector<1x8x8xf32>
    %34 = tpu.concatenate %30, %31, %32, %33 in 0 : vector<1x8x8xf32>, vector<1x8x8xf32>, vector<1x8x8xf32>, vector<1x8x8xf32> -> vector<4x8x8xf32>
    %35 = vector.extract_strided_slice %15 {offsets = [0, 0], sizes = [8, 8], strides = [1, 1]} : vector<16x32xf32> to vector<8x8xf32>
    %36 = vector.extract_strided_slice %15 {offsets = [0, 8], sizes = [8, 8], strides = [1, 1]} : vector<16x32xf32> to vector<8x8xf32>
    %37 = vector.extract_strided_slice %15 {offsets = [0, 16], sizes = [8, 8], strides = [1, 1]} : vector<16x32xf32> to vector<8x8xf32>
    %38 = vector.extract_strided_slice %15 {offsets = [0, 24], sizes = [8, 8], strides = [1, 1]} : vector<16x32xf32> to vector<8x8xf32>
    %39 = vector.shape_cast %35 : vector<8x8xf32> to vector<1x8x8xf32>
    %40 = vector.shape_cast %36 : vector<8x8xf32> to vector<1x8x8xf32>
    %41 = vector.shape_cast %37 : vector<8x8xf32> to vector<1x8x8xf32>
    %42 = vector.shape_cast %38 : vector<8x8xf32> to vector<1x8x8xf32>
    %43 = tpu.concatenate %39, %40, %41, %42 in 0 : vector<1x8x8xf32>, vector<1x8x8xf32>, vector<1x8x8xf32>, vector<1x8x8xf32> -> vector<4x8x8xf32>
    "tpu.trace_start"() <{level = 10 : i32, message = "hqw,hkw->hqk"}> : () -> ()
    %cst_12 = arith.constant dense<0.000000e+00> : vector<4x8x8xf32>
    %44 = tpu.matmul %25, %34, %cst_12 {dimension_numbers = #tpu.dot_dimension_numbers<[2], [2], [1], [1], [0, 0, 0, 1, 1, 1], [0], [0]>} : vector<4x8x8xf32>, vector<4x8x8xf32>, vector<4x8x8xf32> -> vector<4x8x8xf32>
    "tpu.trace_stop"() : () -> ()
    %45 = vector.extract_strided_slice %16 {offsets = [0, 0, 0], sizes = [1, 1, 8], strides = [1, 1, 1]} : vector<2x1x8xf32> to vector<1x1x8xf32>
    %46 = vector.shape_cast %45 : vector<1x1x8xf32> to vector<1x8xf32>
    %47 = vector.shape_cast %46 : vector<1x8xf32> to vector<1x1x8xf32>
    %48 = vector.broadcast %47 : vector<1x1x8xf32> to vector<4x8x8xf32>
    %49 = arith.addf %44, %48 : vector<4x8x8xf32>
    %cst_13 = arith.constant dense<0xFF800000> : vector<4x8xf32>
    %50 = vector.multi_reduction <maximumf>, %49, %cst_13 [2] : vector<4x8x8xf32> to vector<4x8xf32>
    %51 = vector.shape_cast %50 : vector<4x8xf32> to vector<4x8x1xf32>
    %52 = vector.broadcast %51 : vector<4x8x1xf32> to vector<4x8x8xf32>
    %53 = arith.subf %49, %52 : vector<4x8x8xf32>
    %54 = math.exp %53 : vector<4x8x8xf32>
    %cst_14 = arith.constant dense<0.000000e+00> : vector<4x8xf32>
    %55 = vector.multi_reduction <add>, %54, %cst_14 [2] : vector<4x8x8xf32> to vector<4x8xf32>
    %56 = vector.shape_cast %55 : vector<4x8xf32> to vector<4x8x1xf32>
    %57 = vector.broadcast %56 : vector<4x8x1xf32> to vector<4x8x8xf32>
    %58 = arith.divf %54, %57 : vector<4x8x8xf32>
    "tpu.trace_start"() <{level = 10 : i32, message = "hqk,hkw->hqw"}> : () -> ()
    %cst_15 = arith.constant dense<0.000000e+00> : vector<4x8x8xf32>
    %59 = tpu.matmul %58, %43, %cst_15 {dimension_numbers = #tpu.dot_dimension_numbers<[2], [1], [1], [2], [0, 0, 0, 1, 1, 2], [0], [0]>} : vector<4x8x8xf32>, vector<4x8x8xf32>, vector<4x8x8xf32> -> vector<4x8x8xf32>
    "tpu.trace_stop"() : () -> ()
    %60 = vector.extract_strided_slice %59 {offsets = [0, 0, 0], sizes = [1, 8, 8], strides = [1, 1, 1]} : vector<4x8x8xf32> to vector<1x8x8xf32>
    %61 = vector.shape_cast %60 : vector<1x8x8xf32> to vector<8x8xf32>
    %62 = vector.extract_strided_slice %59 {offsets = [1, 0, 0], sizes = [1, 8, 8], strides = [1, 1, 1]} : vector<4x8x8xf32> to vector<1x8x8xf32>
    %63 = vector.shape_cast %62 : vector<1x8x8xf32> to vector<8x8xf32>
    %64 = vector.extract_strided_slice %59 {offsets = [2, 0, 0], sizes = [1, 8, 8], strides = [1, 1, 1]} : vector<4x8x8xf32> to vector<1x8x8xf32>
    %65 = vector.shape_cast %64 : vector<1x8x8xf32> to vector<8x8xf32>
    %66 = vector.extract_strided_slice %59 {offsets = [3, 0, 0], sizes = [1, 8, 8], strides = [1, 1, 1]} : vector<4x8x8xf32> to vector<1x8x8xf32>
    %67 = vector.shape_cast %66 : vector<1x8x8xf32> to vector<8x8xf32>
    %68 = tpu.concatenate %61, %63, %65, %67 in 1 : vector<8x8xf32>, vector<8x8xf32>, vector<8x8xf32>, vector<8x8xf32> -> vector<8x32xf32>
    %69 = vector.extract_strided_slice %13 {offsets = [8, 0], sizes = [8, 8], strides = [1, 1]} : vector<16x32xf32> to vector<8x8xf32>
    %70 = vector.extract_strided_slice %13 {offsets = [8, 8], sizes = [8, 8], strides = [1, 1]} : vector<16x32xf32> to vector<8x8xf32>
    %71 = vector.extract_strided_slice %13 {offsets = [8, 16], sizes = [8, 8], strides = [1, 1]} : vector<16x32xf32> to vector<8x8xf32>
    %72 = vector.extract_strided_slice %13 {offsets = [8, 24], sizes = [8, 8], strides = [1, 1]} : vector<16x32xf32> to vector<8x8xf32>
    %73 = vector.shape_cast %69 : vector<8x8xf32> to vector<1x8x8xf32>
    %74 = vector.shape_cast %70 : vector<8x8xf32> to vector<1x8x8xf32>
    %75 = vector.shape_cast %71 : vector<8x8xf32> to vector<1x8x8xf32>
    %76 = vector.shape_cast %72 : vector<8x8xf32> to vector<1x8x8xf32>
    %77 = tpu.concatenate %73, %74, %75, %76 in 0 : vector<1x8x8xf32>, vector<1x8x8xf32>, vector<1x8x8xf32>, vector<1x8x8xf32> -> vector<4x8x8xf32>
    %78 = vector.extract_strided_slice %14 {offsets = [8, 0], sizes = [8, 8], strides = [1, 1]} : vector<16x32xf32> to vector<8x8xf32>
    %79 = vector.extract_strided_slice %14 {offsets = [8, 8], sizes = [8, 8], strides = [1, 1]} : vector<16x32xf32> to vector<8x8xf32>
    %80 = vector.extract_strided_slice %14 {offsets = [8, 16], sizes = [8, 8], strides = [1, 1]} : vector<16x32xf32> to vector<8x8xf32>
    %81 = vector.extract_strided_slice %14 {offsets = [8, 24], sizes = [8, 8], strides = [1, 1]} : vector<16x32xf32> to vector<8x8xf32>
    %82 = vector.shape_cast %78 : vector<8x8xf32> to vector<1x8x8xf32>
    %83 = vector.shape_cast %79 : vector<8x8xf32> to vector<1x8x8xf32>
    %84 = vector.shape_cast %80 : vector<8x8xf32> to vector<1x8x8xf32>
    %85 = vector.shape_cast %81 : vector<8x8xf32> to vector<1x8x8xf32>
    %86 = tpu.concatenate %82, %83, %84, %85 in 0 : vector<1x8x8xf32>, vector<1x8x8xf32>, vector<1x8x8xf32>, vector<1x8x8xf32> -> vector<4x8x8xf32>
    %87 = vector.extract_strided_slice %15 {offsets = [8, 0], sizes = [8, 8], strides = [1, 1]} : vector<16x32xf32> to vector<8x8xf32>
    %88 = vector.extract_strided_slice %15 {offsets = [8, 8], sizes = [8, 8], strides = [1, 1]} : vector<16x32xf32> to vector<8x8xf32>
    %89 = vector.extract_strided_slice %15 {offsets = [8, 16], sizes = [8, 8], strides = [1, 1]} : vector<16x32xf32> to vector<8x8xf32>
    %90 = vector.extract_strided_slice %15 {offsets = [8, 24], sizes = [8, 8], strides = [1, 1]} : vector<16x32xf32> to vector<8x8xf32>
    %91 = vector.shape_cast %87 : vector<8x8xf32> to vector<1x8x8xf32>
    %92 = vector.shape_cast %88 : vector<8x8xf32> to vector<1x8x8xf32>
    %93 = vector.shape_cast %89 : vector<8x8xf32> to vector<1x8x8xf32>
    %94 = vector.shape_cast %90 : vector<8x8xf32> to vector<1x8x8xf32>
    %95 = tpu.concatenate %91, %92, %93, %94 in 0 : vector<1x8x8xf32>, vector<1x8x8xf32>, vector<1x8x8xf32>, vector<1x8x8xf32> -> vector<4x8x8xf32>
    "tpu.trace_start"() <{level = 10 : i32, message = "hqw,hkw->hqk"}> : () -> ()
    %cst_16 = arith.constant dense<0.000000e+00> : vector<4x8x8xf32>
    %96 = tpu.matmul %77, %86, %cst_16 {dimension_numbers = #tpu.dot_dimension_numbers<[2], [2], [1], [1], [0, 0, 0, 1, 1, 1], [0], [0]>} : vector<4x8x8xf32>, vector<4x8x8xf32>, vector<4x8x8xf32> -> vector<4x8x8xf32>
    "tpu.trace_stop"() : () -> ()
    %97 = vector.extract_strided_slice %16 {offsets = [1, 0, 0], sizes = [1, 1, 8], strides = [1, 1, 1]} : vector<2x1x8xf32> to vector<1x1x8xf32>
    %98 = vector.shape_cast %97 : vector<1x1x8xf32> to vector<1x8xf32>
    %99 = vector.shape_cast %98 : vector<1x8xf32> to vector<1x1x8xf32>
    %100 = vector.broadcast %99 : vector<1x1x8xf32> to vector<4x8x8xf32>
    %101 = arith.addf %96, %100 : vector<4x8x8xf32>
    %cst_17 = arith.constant dense<0xFF800000> : vector<4x8xf32>
    %102 = vector.multi_reduction <maximumf>, %101, %cst_17 [2] : vector<4x8x8xf32> to vector<4x8xf32>
    %103 = vector.shape_cast %102 : vector<4x8xf32> to vector<4x8x1xf32>
    %104 = vector.broadcast %103 : vector<4x8x1xf32> to vector<4x8x8xf32>
    %105 = arith.subf %101, %104 : vector<4x8x8xf32>
    %106 = math.exp %105 : vector<4x8x8xf32>
    %cst_18 = arith.constant dense<0.000000e+00> : vector<4x8xf32>
    %107 = vector.multi_reduction <add>, %106, %cst_18 [2] : vector<4x8x8xf32> to vector<4x8xf32>
    %108 = vector.shape_cast %107 : vector<4x8xf32> to vector<4x8x1xf32>
    %109 = vector.broadcast %108 : vector<4x8x1xf32> to vector<4x8x8xf32>
    %110 = arith.divf %106, %109 : vector<4x8x8xf32>
    "tpu.trace_start"() <{level = 10 : i32, message = "hqk,hkw->hqw"}> : () -> ()
    %cst_19 = arith.constant dense<0.000000e+00> : vector<4x8x8xf32>
    %111 = tpu.matmul %110, %95, %cst_19 {dimension_numbers = #tpu.dot_dimension_numbers<[2], [1], [1], [2], [0, 0, 0, 1, 1, 2], [0], [0]>} : vector<4x8x8xf32>, vector<4x8x8xf32>, vector<4x8x8xf32> -> vector<4x8x8xf32>
    "tpu.trace_stop"() : () -> ()
    %112 = vector.extract_strided_slice %111 {offsets = [0, 0, 0], sizes = [1, 8, 8], strides = [1, 1, 1]} : vector<4x8x8xf32> to vector<1x8x8xf32>
    %113 = vector.shape_cast %112 : vector<1x8x8xf32> to vector<8x8xf32>
    %114 = vector.extract_strided_slice %111 {offsets = [1, 0, 0], sizes = [1, 8, 8], strides = [1, 1, 1]} : vector<4x8x8xf32> to vector<1x8x8xf32>
    %115 = vector.shape_cast %114 : vector<1x8x8xf32> to vector<8x8xf32>
    %116 = vector.extract_strided_slice %111 {offsets = [2, 0, 0], sizes = [1, 8, 8], strides = [1, 1, 1]} : vector<4x8x8xf32> to vector<1x8x8xf32>
    %117 = vector.shape_cast %116 : vector<1x8x8xf32> to vector<8x8xf32>
    %118 = vector.extract_strided_slice %111 {offsets = [3, 0, 0], sizes = [1, 8, 8], strides = [1, 1, 1]} : vector<4x8x8xf32> to vector<1x8x8xf32>
    %119 = vector.shape_cast %118 : vector<1x8x8xf32> to vector<8x8xf32>
    %120 = tpu.concatenate %113, %115, %117, %119 in 1 : vector<8x8xf32>, vector<8x8xf32>, vector<8x8xf32>, vector<8x8xf32> -> vector<8x32xf32>
    %121 = tpu.concatenate %68, %120 in 0 : vector<8x32xf32>, vector<8x32xf32> -> vector<16x32xf32>
    %c0_20 = arith.constant 0 : index
    %c0_21 = arith.constant 0 : index
    %c0_22 = arith.constant 0 : index
    %122 = vector.load %arg8[%c0_20, %c0_21, %c0_22] : memref<1x32x32xf32, #tpu.memory_space<vmem>>, vector<1x32x32xf32>
    %123 = vector.shape_cast %122 : vector<1x32x32xf32> to vector<32x32xf32>
    %cst_23 = arith.constant dense<0.000000e+00> : vector<16x32xf32>
    %124 = tpu.matmul %121, %123, %cst_23 {dimension_numbers = #tpu.dot_dimension_numbers<[1], [0], [0], [1], [0, 0, 1, 1], [], []>} : vector<16x32xf32>, vector<32x32xf32>, vector<16x32xf32> -> vector<16x32xf32>
    %c0_24 = arith.constant 0 : index
    %c0_25 = arith.constant 0 : index
    %c0_26 = arith.constant 0 : index
    %125 = vector.load %arg9[%c0_24, %c0_25, %c0_26] : memref<1x1x32xf32, #tpu.memory_space<vmem>>, vector<1x1x32xf32>
    %126 = vector.shape_cast %125 : vector<1x1x32xf32> to vector<1x32xf32>
    %127 = vector.broadcast %126 : vector<1x32xf32> to vector<16x32xf32>
    %128 = arith.addf %124, %127 : vector<16x32xf32>
    %129 = arith.addf %3, %128 : vector<16x32xf32>
    %c0_27 = arith.constant 0 : index
    %c0_28 = arith.constant 0 : index
    %c0_29 = arith.constant 0 : index
    %130 = vector.load %arg10[%c0_27, %c0_28, %c0_29] : memref<1x1x32xf32, #tpu.memory_space<vmem>>, vector<1x1x32xf32>
    %131 = vector.shape_cast %130 : vector<1x1x32xf32> to vector<1x32xf32>
    %c0_30 = arith.constant 0 : index
    %c0_31 = arith.constant 0 : index
    %c0_32 = arith.constant 0 : index
    %132 = vector.load %arg11[%c0_30, %c0_31, %c0_32] : memref<1x1x32xf32, #tpu.memory_space<vmem>>, vector<1x1x32xf32>
    %133 = vector.shape_cast %132 : vector<1x1x32xf32> to vector<1x32xf32>
    %cst_33 = arith.constant dense<0.000000e+00> : vector<16xf32>
    %134 = vector.multi_reduction <add>, %129, %cst_33 [1] : vector<16x32xf32> to vector<16xf32>
    %135 = vector.shape_cast %134 : vector<16xf32> to vector<16x1xf32>
    %cst_34 = arith.constant 3.200000e+01 : f32
    %136 = vector.broadcast %cst_34 : f32 to vector<16x1xf32>
    %137 = arith.divf %135, %136 : vector<16x1xf32>
    %138 = vector.broadcast %137 : vector<16x1xf32> to vector<16x32xf32>
    %139 = arith.subf %129, %138 : vector<16x32xf32>
    %140 = arith.mulf %139, %139 : vector<16x32xf32>
    %cst_35 = arith.constant dense<0.000000e+00> : vector<16xf32>
    %141 = vector.multi_reduction <add>, %140, %cst_35 [1] : vector<16x32xf32> to vector<16xf32>
    %142 = vector.shape_cast %141 : vector<16xf32> to vector<16x1xf32>
    %cst_36 = arith.constant 3.200000e+01 : f32
    %143 = vector.broadcast %cst_36 : f32 to vector<16x1xf32>
    %144 = arith.divf %142, %143 : vector<16x1xf32>
    %cst_37 = arith.constant 9.99999996E-13 : f32
    %145 = vector.broadcast %cst_37 : f32 to vector<16x1xf32>
    %146 = arith.addf %144, %145 : vector<16x1xf32>
    %147 = math.rsqrt %146 : vector<16x1xf32>
    %148 = vector.broadcast %147 : vector<16x1xf32> to vector<16x32xf32>
    %149 = arith.mulf %139, %148 : vector<16x32xf32>
    %150 = vector.broadcast %131 : vector<1x32xf32> to vector<16x32xf32>
    %151 = arith.mulf %150, %149 : vector<16x32xf32>
    %152 = vector.broadcast %133 : vector<1x32xf32> to vector<16x32xf32>
    %153 = arith.addf %151, %152 : vector<16x32xf32>
    %c0_38 = arith.constant 0 : index
    %c0_39 = arith.constant 0 : index
    %c0_40 = arith.constant 0 : index
    %154 = vector.load %arg12[%c0_38, %c0_39, %c0_40] : memref<1x32x128xf32, #tpu.memory_space<vmem>>, vector<1x32x128xf32>
    %155 = vector.shape_cast %154 : vector<1x32x128xf32> to vector<32x128xf32>
    %cst_41 = arith.constant dense<0.000000e+00> : vector<16x128xf32>
    %156 = tpu.matmul %153, %155, %cst_41 {dimension_numbers = #tpu.dot_dimension_numbers<[1], [0], [0], [1], [0, 0, 1, 1], [], []>} : vector<16x32xf32>, vector<32x128xf32>, vector<16x128xf32> -> vector<16x128xf32>
    %c0_42 = arith.constant 0 : index
    %c0_43 = arith.constant 0 : index
    %c0_44 = arith.constant 0 : index
    %157 = vector.load %arg13[%c0_42, %c0_43, %c0_44] : memref<1x1x128xf32, #tpu.memory_space<vmem>>, vector<1x1x128xf32>
    %158 = vector.shape_cast %157 : vector<1x1x128xf32> to vector<1x128xf32>
    %159 = vector.broadcast %158 : vector<1x128xf32> to vector<16x128xf32>
    %160 = arith.addf %156, %159 : vector<16x128xf32>
    %cst_45 = arith.constant 5.000000e-01 : f32
    %161 = vector.broadcast %cst_45 : f32 to vector<16x128xf32>
    %162 = arith.mulf %160, %161 : vector<16x128xf32>
    %cst_46 = arith.constant 1.41421354 : f32
    %163 = vector.broadcast %cst_46 : f32 to vector<16x128xf32>
    %164 = arith.divf %160, %163 : vector<16x128xf32>
    %165 = math.erf %164 : vector<16x128xf32>
    %cst_47 = arith.constant 1.000000e+00 : f32
    %166 = vector.broadcast %cst_47 : f32 to vector<16x128xf32>
    %167 = arith.addf %166, %165 : vector<16x128xf32>
    %168 = arith.mulf %162, %167 : vector<16x128xf32>
    %c0_48 = arith.constant 0 : index
    %c0_49 = arith.constant 0 : index
    %c0_50 = arith.constant 0 : index
    %169 = vector.load %arg14[%c0_48, %c0_49, %c0_50] : memref<1x128x32xf32, #tpu.memory_space<vmem>>, vector<1x128x32xf32>
    %170 = vector.shape_cast %169 : vector<1x128x32xf32> to vector<128x32xf32>
    %cst_51 = arith.constant dense<0.000000e+00> : vector<16x32xf32>
    %171 = tpu.matmul %168, %170, %cst_51 {dimension_numbers = #tpu.dot_dimension_numbers<[1], [0], [0], [1], [0, 0, 1, 1], [], []>} : vector<16x128xf32>, vector<128x32xf32>, vector<16x32xf32> -> vector<16x32xf32>
    %c0_52 = arith.constant 0 : index
    %c0_53 = arith.constant 0 : index
    %c0_54 = arith.constant 0 : index
    %172 = vector.load %arg15[%c0_52, %c0_53, %c0_54] : memref<1x1x32xf32, #tpu.memory_space<vmem>>, vector<1x1x32xf32>
    %173 = vector.shape_cast %172 : vector<1x1x32xf32> to vector<1x32xf32>
    %174 = vector.broadcast %173 : vector<1x32xf32> to vector<16x32xf32>
    %175 = arith.addf %171, %174 : vector<16x32xf32>
    %176 = arith.addf %153, %175 : vector<16x32xf32>
    %c0_55 = arith.constant 0 : index
    %c0_56 = arith.constant 0 : index
    %c0_57 = arith.constant 0 : index
    %177 = vector.load %arg16[%c0_55, %c0_56, %c0_57] : memref<1x1x32xf32, #tpu.memory_space<vmem>>, vector<1x1x32xf32>
    %178 = vector.shape_cast %177 : vector<1x1x32xf32> to vector<1x32xf32>
    %c0_58 = arith.constant 0 : index
    %c0_59 = arith.constant 0 : index
    %c0_60 = arith.constant 0 : index
    %179 = vector.load %arg17[%c0_58, %c0_59, %c0_60] : memref<1x1x32xf32, #tpu.memory_space<vmem>>, vector<1x1x32xf32>
    %180 = vector.shape_cast %179 : vector<1x1x32xf32> to vector<1x32xf32>
    %cst_61 = arith.constant dense<0.000000e+00> : vector<16xf32>
    %181 = vector.multi_reduction <add>, %176, %cst_61 [1] : vector<16x32xf32> to vector<16xf32>
    %182 = vector.shape_cast %181 : vector<16xf32> to vector<16x1xf32>
    %cst_62 = arith.constant 3.200000e+01 : f32
    %183 = vector.broadcast %cst_62 : f32 to vector<16x1xf32>
    %184 = arith.divf %182, %183 : vector<16x1xf32>
    %185 = vector.broadcast %184 : vector<16x1xf32> to vector<16x32xf32>
    %186 = arith.subf %176, %185 : vector<16x32xf32>
    %187 = arith.mulf %186, %186 : vector<16x32xf32>
    %cst_63 = arith.constant dense<0.000000e+00> : vector<16xf32>
    %188 = vector.multi_reduction <add>, %187, %cst_63 [1] : vector<16x32xf32> to vector<16xf32>
    %189 = vector.shape_cast %188 : vector<16xf32> to vector<16x1xf32>
    %cst_64 = arith.constant 3.200000e+01 : f32
    %190 = vector.broadcast %cst_64 : f32 to vector<16x1xf32>
    %191 = arith.divf %189, %190 : vector<16x1xf32>
    %cst_65 = arith.constant 9.99999996E-13 : f32
    %192 = vector.broadcast %cst_65 : f32 to vector<16x1xf32>
    %193 = arith.addf %191, %192 : vector<16x1xf32>
    %194 = math.rsqrt %193 : vector<16x1xf32>
    %195 = vector.broadcast %194 : vector<16x1xf32> to vector<16x32xf32>
    %196 = arith.mulf %186, %195 : vector<16x32xf32>
    %197 = vector.broadcast %178 : vector<1x32xf32> to vector<16x32xf32>
    %198 = arith.mulf %197, %196 : vector<16x32xf32>
    %199 = vector.broadcast %180 : vector<1x32xf32> to vector<16x32xf32>
    %200 = arith.addf %198, %199 : vector<16x32xf32>
    %c0_66 = arith.constant 0 : index
    %c0_67 = arith.constant 0 : index
    %201 = vector.load %arg19[%c0_66, %c0_67] : memref<16x32xf32, #tpu.memory_space<vmem>>, vector<16x32xf32>
    tpu.vector_store %arg19[%c0_66, %c0_67], %200 {strides = array<i32>} : memref<16x32xf32, #tpu.memory_space<vmem>>, vector<16x32xf32>,
    %c1_i32 = arith.constant 1 : i32
    %202 = arith.cmpi eq, %arg1, %c1_i32 : i32
    %203 = arith.extui %202 : i1 to i32
    %c0_i32_68 = arith.constant 0 : i32
    %204 = arith.cmpi ne, %203, %c0_i32_68 : i32
    scf.if %204 {
      %c0_69 = arith.constant 0 : index
      %c0_70 = arith.constant 0 : index
      %205 = vector.load %arg18[%c0_69, %c0_70] : memref<16x32xf32, #tpu.memory_space<vmem>>, vector<16x32xf32>
      tpu.vector_store %arg18[%c0_69, %c0_70], %200 {strides = array<i32>} : memref<16x32xf32, #tpu.memory_space<vmem>>, vector<16x32xf32>,
    } else {
    }
    return
  }
  func.func @transform_0(%arg0: i32, %arg1: i32) -> (i32, i32) {
    %c0_i32 = arith.constant 0 : i32
    %c0_i32_0 = arith.constant 0 : i32
    return %arg0, %c0_i32 : i32, i32
  }
  func.func @transform_1(%arg0: i32, %arg1: i32) -> (i32, i32, i32) {
    %c0_i32 = arith.constant 0 : i32
    %c0_i32_0 = arith.constant 0 : i32
    %c0_i32_1 = arith.constant 0 : i32
    return %arg0, %c0_i32, %c0_i32_0 : i32, i32, i32
  }
  func.func @transform_2(%arg0: i32, %arg1: i32) -> (i32, i32) {
    %c0_i32 = arith.constant 0 : i32
    %c0_i32_0 = arith.constant 0 : i32
    %c0_i32_1 = arith.constant 0 : i32
    return %c0_i32, %c0_i32_0 : i32, i32
  }
  func.func @transform_3(%arg0: i32, %arg1: i32) -> (i32, i32) {
    %c0_i32 = arith.constant 0 : i32
    %c0_i32_0 = arith.constant 0 : i32
    %c0_i32_1 = arith.constant 0 : i32
    return %c0_i32, %c0_i32_0 : i32, i32
  }
  func.func @transform_4(%arg0: i32, %arg1: i32) -> (i32, i32, i32) {
    %c0_i32 = arith.constant 0 : i32
    %c0_i32_0 = arith.constant 0 : i32
    %c0_i32_1 = arith.constant 0 : i32
    return %arg1, %c0_i32, %c0_i32_0 : i32, i32, i32
  }
  func.func @transform_5(%arg0: i32, %arg1: i32) -> (i32, i32, i32) {
    %c0_i32 = arith.constant 0 : i32
    %c0_i32_0 = arith.constant 0 : i32
    %c0_i32_1 = arith.constant 0 : i32
    return %arg1, %c0_i32, %c0_i32_0 : i32, i32, i32
  }
  func.func @transform_6(%arg0: i32, %arg1: i32) -> (i32, i32, i32) {
    %c0_i32 = arith.constant 0 : i32
    %c0_i32_0 = arith.constant 0 : i32
    %c0_i32_1 = arith.constant 0 : i32
    return %arg1, %c0_i32, %c0_i32_0 : i32, i32, i32
  }
  func.func @transform_7(%arg0: i32, %arg1: i32) -> (i32, i32, i32) {
    %c0_i32 = arith.constant 0 : i32
    %c0_i32_0 = arith.constant 0 : i32
    %c0_i32_1 = arith.constant 0 : i32
    return %arg1, %c0_i32, %c0_i32_0 : i32, i32, i32
  }
  func.func @transform_8(%arg0: i32, %arg1: i32) -> (i32, i32, i32) {
    %c0_i32 = arith.constant 0 : i32
    %c0_i32_0 = arith.constant 0 : i32
    %c0_i32_1 = arith.constant 0 : i32
    return %arg1, %c0_i32, %c0_i32_0 : i32, i32, i32
  }
  func.func @transform_9(%arg0: i32, %arg1: i32) -> (i32, i32, i32) {
    %c0_i32 = arith.constant 0 : i32
    %c0_i32_0 = arith.constant 0 : i32
    %c0_i32_1 = arith.constant 0 : i32
    return %arg1, %c0_i32, %c0_i32_0 : i32, i32, i32
  }
  func.func @transform_10(%arg0: i32, %arg1: i32) -> (i32, i32, i32) {
    %c0_i32 = arith.constant 0 : i32
    %c0_i32_0 = arith.constant 0 : i32
    %c0_i32_1 = arith.constant 0 : i32
    return %arg1, %c0_i32, %c0_i32_0 : i32, i32, i32
  }
  func.func @transform_11(%arg0: i32, %arg1: i32) -> (i32, i32, i32) {
    %c0_i32 = arith.constant 0 : i32
    %c0_i32_0 = arith.constant 0 : i32
    %c0_i32_1 = arith.constant 0 : i32
    return %arg1, %c0_i32, %c0_i32_0 : i32, i32, i32
  }
  func.func @transform_12(%arg0: i32, %arg1: i32) -> (i32, i32, i32) {
    %c0_i32 = arith.constant 0 : i32
    %c0_i32_0 = arith.constant 0 : i32
    %c0_i32_1 = arith.constant 0 : i32
    return %arg1, %c0_i32, %c0_i32_0 : i32, i32, i32
  }
  func.func @transform_13(%arg0: i32, %arg1: i32) -> (i32, i32, i32) {
    %c0_i32 = arith.constant 0 : i32
    %c0_i32_0 = arith.constant 0 : i32
    %c0_i32_1 = arith.constant 0 : i32
    return %arg1, %c0_i32, %c0_i32_0 : i32, i32, i32
  }
  func.func @transform_14(%arg0: i32, %arg1: i32) -> (i32, i32, i32) {
    %c0_i32 = arith.constant 0 : i32
    %c0_i32_0 = arith.constant 0 : i32
    %c0_i32_1 = arith.constant 0 : i32
    return %arg1, %c0_i32, %c0_i32_0 : i32, i32, i32
  }
  func.func @transform_15(%arg0: i32, %arg1: i32) -> (i32, i32, i32) {
    %c0_i32 = arith.constant 0 : i32
    %c0_i32_0 = arith.constant 0 : i32
    %c0_i32_1 = arith.constant 0 : i32
    return %arg1, %c0_i32, %c0_i32_0 : i32, i32, i32
  }
  func.func @transform_16(%arg0: i32, %arg1: i32) -> (i32, i32) {
    %c0_i32 = arith.constant 0 : i32
    %c0_i32_0 = arith.constant 0 : i32
    return %arg0, %c0_i32 : i32, i32
  }
}

</mosaic_0001>

<llo_original>
// kernel: encoder_stack_forward.1
$region0: #{encoder_stack_forward.1}
  #allocation0 [shape = 'u32[]', space=smem, size = 0x4, offset = 0x4, fixed_abs, tag = 'smem constant byte address 0x4 - core index']
  #allocation1 [shape = 'u32[72,128]{1,0:T(1,128)}', space=vmem, size = 0x9000, scoped, tag = 'internal scratch']
  #allocation2 [shape = 'f32[16,32]{1,0:T(8,128)}', space=vmem, size = 0x2000, scoped, tag = 'scratch operand']
  %s0 = inlined_call_operand.vmem [shape: f32[16,32], index: 0, kind: input, shape index: {}]
  %s1 = inlined_call_operand.vmem [shape: f32[2,1,8], index: 1, kind: input, shape index: {}]
  %s2 = inlined_call_operand.vmem [shape: f32[1,32], index: 2, kind: input, shape index: {}]
  %s3 = inlined_call_operand.vmem [shape: f32[1,32], index: 3, kind: input, shape index: {}]
  %s4 = inlined_call_operand.vmem [shape: f32[2,32,96], index: 4, kind: input, shape index: {}]
  %s5 = inlined_call_operand.vmem [shape: f32[2,1,96], index: 5, kind: input, shape index: {}]
  %s6 = inlined_call_operand.vmem [shape: f32[2,32,32], index: 6, kind: input, shape index: {}]
  %s7 = inlined_call_operand.vmem [shape: f32[2,1,32], index: 7, kind: input, shape index: {}]
  %s8 = inlined_call_operand.vmem [shape: f32[2,1,32], index: 8, kind: input, shape index: {}]
  %s9 = inlined_call_operand.vmem [shape: f32[2,1,32], index: 9, kind: input, shape index: {}]
  %s10 = inlined_call_operand.vmem [shape: f32[2,32,128], index: 10, kind: input, shape index: {}]
  %s11 = inlined_call_operand.vmem [shape: f32[2,1,128], index: 11, kind: input, shape index: {}]
  %s12 = inlined_call_operand.vmem [shape: f32[2,128,32], index: 12, kind: input, shape index: {}]
  %s13 = inlined_call_operand.vmem [shape: f32[2,1,32], index: 13, kind: input, shape index: {}]
  %s14 = inlined_call_operand.vmem [shape: f32[2,1,32], index: 14, kind: input, shape index: {}]
  %s15 = inlined_call_operand.vmem [shape: f32[2,1,32], index: 15, kind: input, shape index: {}]
  %s16 = inlined_call_operand.hbm [shape: f32[16,32], index: 16, kind: output, shape index: {}]
  %s17 = sld [smem:[#allocation0]]
  $region105: #{encoder_stack_forward.1} parent=0
    _
  %s19 = ssub.s32 1, %s17
  %s20 = scalar_select 0, %s19, %s17
  $region1: #{encoder_stack_forward.1} parent=0
    #allocation3 [shape = 'u8[8192]{0}', space=vmem, size = 0x2000, scoped, tag = 'output window, operand 0, single buffered']
    #allocation4 [shape = 's32[2]{0}', space=sflag, size = 0x8, scoped, tag = 'scoped memory for encoder_stack_forward.1']
    %21 = vsyncpa [#allocation4], 0
    loop: start=0, step=1, limit=4
    $region2: #{encoder_stack_forward.1} parent=1 // loop_pre_header
      _
    $region3: #{encoder_stack_forward.1} parent=1 // loop_header
      %s23 = sphi 0, %s27
      %p24 = scmp.ge.s32.totalorder %s23, 4
      %s30 = sphi 0, %s42
      %s31 = sphi 0, %s38
      %s32 = sphi 0, %s30
      %s33 = sphi 0, %s31
      %s34 = sphi 0, %s32
      %s35 = sphi 0, %s33
      %s45 = sphi 0, %s47
      %s48 = sphi 0, %s45
      %s49 = sphi 0, %s48
      %s65 = sphi 0, %s49
      %s71 = sphi 0, %s73
      %s74 = sphi 0, %s71
      %s75 = sphi 0, %s74
      %s91 = sphi 0, %s75
      %s95 = sphi 0, %s95
      %s97 = sphi 0, %s95
      %s98 = sphi 0, %s97
      %s112 = sphi 0, %s98
      %s116 = sphi 0, %s116
      %s118 = sphi 0, %s116
      %s119 = sphi 0, %s118
      %s133 = sphi 0, %s119
      %s139 = sphi 0, %s141
      %s142 = sphi 0, %s139
      %s143 = sphi 0, %s142
      %s159 = sphi 0, %s143
      %s165 = sphi 0, %s167
      %s168 = sphi 0, %s165
      %s169 = sphi 0, %s168
      %s185 = sphi 0, %s169
      %s191 = sphi 0, %s193
      %s194 = sphi 0, %s191
      %s195 = sphi 0, %s194
      %s211 = sphi 0, %s195
      %s217 = sphi 0, %s219
      %s220 = sphi 0, %s217
      %s221 = sphi 0, %s220
      %s237 = sphi 0, %s221
      %s243 = sphi 0, %s245
      %s246 = sphi 0, %s243
      %s247 = sphi 0, %s246
      %s263 = sphi 0, %s247
      %s269 = sphi 0, %s271
      %s272 = sphi 0, %s269
      %s273 = sphi 0, %s272
      %s289 = sphi 0, %s273
      %s295 = sphi 0, %s297
      %s298 = sphi 0, %s295
      %s299 = sphi 0, %s298
      %s315 = sphi 0, %s299
      %s321 = sphi 0, %s323
      %s324 = sphi 0, %s321
      %s325 = sphi 0, %s324
      %s341 = sphi 0, %s325
      %s347 = sphi 0, %s349
      %s350 = sphi 0, %s347
      %s351 = sphi 0, %s350
      %s367 = sphi 0, %s351
      %s373 = sphi 0, %s375
      %s376 = sphi 0, %s373
      %s377 = sphi 0, %s376
      %s393 = sphi 0, %s377
      %s399 = sphi 0, %s401
      %s402 = sphi 0, %s399
      %s403 = sphi 0, %s402
      %s419 = sphi 0, %s403
      %s425 = sphi 0, %s427
      %s428 = sphi 0, %s425
      %s429 = sphi 0, %s428
      %s445 = sphi 0, %s429
      %s451 = sphi 0, %s453
      %s454 = sphi 0, %s451
      %s455 = sphi 0, %s454
      %s471 = sphi 0, %s455
    $region4: #{encoder_stack_forward.1} parent=1 // loop_header_branch
      %26 = sbr.rel (%p24) target = $region8
    $region5: #{encoder_stack_forward.1} parent=1 // loop_body
      %s28 = ssub.s32 %s23, 1
      %s29 = ssub.s32 %s23, 2
      %s36 = sadd.s32 1, %s31
      %p37 = scmp.ge.s32.totalorder %s36, 2
      %s38 = scalar_select %p37, 0, %s36
      %s39 = sadd.s32 1, %s30
      %s40 = scalar_select %p37, %s39, %s30
      %p41 = scmp.ge.s32.totalorder %s40, 1
      %s42 = scalar_select %p41, 0, %s40
      %s43 = ssub.s32 %s30, %s42
      %p44 = scmp.eq.s32.totalorder %s43, 0
      %s46 = sadd.s32 %s45, 1
      %s47 = scalar_select %p44, %s45, %s46
      %p50 = pneg %p44
      %p51 = scmp.eq.s32.totalorder %s23, 1
      %p52 = por %p50, %p51
      %p53 = scmp.ne.s32.totalorder %s45, %s48
      %p54 = scmp.eq.s32.totalorder %s23, 0
      %p55 = por %p53, %p54
      %p56 = scmp.ne.s32.totalorder %s45, %s48
      %p57 = scmp.eq.s32.totalorder %s28, 1
      %p58 = por %p56, %p57
      %p59 = scmp.ne.s32.totalorder %s48, %s49
      %p60 = scmp.eq.s32.totalorder %s28, 0
      %p61 = por %p59, %p60
      %p62 = scmp.ne.s32.totalorder %s48, %s49
      %p63 = scmp.eq.s32.totalorder %s29, 1
      %p64 = por %p62, %p63
      %p66 = scmp.ne.s32.totalorder %s49, %s65
      %p67 = scmp.eq.s32.totalorder %s29, 0
      %p68 = por %p66, %p67
      %s69 = ssub.s32 %s30, %s42
      %p70 = scmp.eq.s32.totalorder %s69, 0
      %s72 = sadd.s32 %s71, 1
      %s73 = scalar_select %p70, %s71, %s72
      %p76 = pneg %p70
      %p77 = scmp.eq.s32.totalorder %s23, 1
      %p78 = por %p76, %p77
      %p79 = scmp.ne.s32.totalorder %s71, %s74
      %p80 = scmp.eq.s32.totalorder %s23, 0
      %p81 = por %p79, %p80
      %p82 = scmp.ne.s32.totalorder %s71, %s74
      %p83 = scmp.eq.s32.totalorder %s28, 1
      %p84 = por %p82, %p83
      %p85 = scmp.ne.s32.totalorder %s74, %s75
      %p86 = scmp.eq.s32.totalorder %s28, 0
      %p87 = por %p85, %p86
      %p88 = scmp.ne.s32.totalorder %s74, %s75
      %p89 = scmp.eq.s32.totalorder %s29, 1
      %p90 = por %p88, %p89
      %p92 = scmp.ne.s32.totalorder %s75, %s91
      %p93 = scmp.eq.s32.totalorder %s29, 0
      %p94 = por %p92, %p93
      %s96 = sadd.s32 %s95, 1
      %p99 = scmp.eq.s32.totalorder %s23, 1
      %p100 = scmp.ne.s32.totalorder %s95, %s97
      %p101 = scmp.eq.s32.totalorder %s23, 0
      %p102 = por %p100, %p101
      %p103 = scmp.ne.s32.totalorder %s95, %s97
      %p104 = scmp.eq.s32.totalorder %s28, 1
      %p105 = por %p103, %p104
      %p106 = scmp.ne.s32.totalorder %s97, %s98
      %p107 = scmp.eq.s32.totalorder %s28, 0
      %p108 = por %p106, %p107
      %p109 = scmp.ne.s32.totalorder %s97, %s98
      %p110 = scmp.eq.s32.totalorder %s29, 1
      %p111 = por %p109, %p110
      %p113 = scmp.ne.s32.totalorder %s98, %s112
      %p114 = scmp.eq.s32.totalorder %s29, 0
      %p115 = por %p113, %p114
      %s117 = sadd.s32 %s116, 1
      %p120 = scmp.eq.s32.totalorder %s23, 1
      %p121 = scmp.ne.s32.totalorder %s116, %s118
      %p122 = scmp.eq.s32.totalorder %s23, 0
      %p123 = por %p121, %p122
      %p124 = scmp.ne.s32.totalorder %s116, %s118
      %p125 = scmp.eq.s32.totalorder %s28, 1
      %p126 = por %p124, %p125
      %p127 = scmp.ne.s32.totalorder %s118, %s119
      %p128 = scmp.eq.s32.totalorder %s28, 0
      %p129 = por %p127, %p128
      %p130 = scmp.ne.s32.totalorder %s118, %s119
      %p131 = scmp.eq.s32.totalorder %s29, 1
      %p132 = por %p130, %p131
      %p134 = scmp.ne.s32.totalorder %s119, %s133
      %p135 = scmp.eq.s32.totalorder %s29, 0
      %p136 = por %p134, %p135
      %s137 = ssub.s32 %s31, %s38
      %p138 = scmp.eq.s32.totalorder %s137, 0
      %s140 = sadd.s32 %s139, 1
      %s141 = scalar_select %p138, %s139, %s140
      %p144 = pneg %p138
      %p145 = scmp.eq.s32.totalorder %s23, 1
      %p146 = por %p144, %p145
      %p147 = scmp.ne.s32.totalorder %s139, %s142
      %p148 = scmp.eq.s32.totalorder %s23, 0
      %p149 = por %p147, %p148
      %p150 = scmp.ne.s32.totalorder %s139, %s142
      %p151 = scmp.eq.s32.totalorder %s28, 1
      %p152 = por %p150, %p151
      %p153 = scmp.ne.s32.totalorder %s142, %s143
      %p154 = scmp.eq.s32.totalorder %s28, 0
      %p155 = por %p153, %p154
      %p156 = scmp.ne.s32.totalorder %s142, %s143
      %p157 = scmp.eq.s32.totalorder %s29, 1
      %p158 = por %p156, %p157
      %p160 = scmp.ne.s32.totalorder %s143, %s159
      %p161 = scmp.eq.s32.totalorder %s29, 0
      %p162 = por %p160, %p161
      %s163 = ssub.s32 %s31, %s38
      %p164 = scmp.eq.s32.totalorder %s163, 0
      %s166 = sadd.s32 %s165, 1
      %s167 = scalar_select %p164, %s165, %s166
      %p170 = pneg %p164
      %p171 = scmp.eq.s32.totalorder %s23, 1
      %p172 = por %p170, %p171
      %p173 = scmp.ne.s32.totalorder %s165, %s168
      %p174 = scmp.eq.s32.totalorder %s23, 0
      %p175 = por %p173, %p174
      %p176 = scmp.ne.s32.totalorder %s165, %s168
      %p177 = scmp.eq.s32.totalorder %s28, 1
      %p178 = por %p176, %p177
      %p179 = scmp.ne.s32.totalorder %s168, %s169
      %p180 = scmp.eq.s32.totalorder %s28, 0
      %p181 = por %p179, %p180
      %p182 = scmp.ne.s32.totalorder %s168, %s169
      %p183 = scmp.eq.s32.totalorder %s29, 1
      %p184 = por %p182, %p183
      %p186 = scmp.ne.s32.totalorder %s169, %s185
      %p187 = scmp.eq.s32.totalorder %s29, 0
      %p188 = por %p186, %p187
      %s189 = ssub.s32 %s31, %s38
      %p190 = scmp.eq.s32.totalorder %s189, 0
      %s192 = sadd.s32 %s191, 1
      %s193 = scalar_select %p190, %s191, %s192
      %p196 = pneg %p190
      %p197 = scmp.eq.s32.totalorder %s23, 1
      %p198 = por %p196, %p197
      %p199 = scmp.ne.s32.totalorder %s191, %s194
      %p200 = scmp.eq.s32.totalorder %s23, 0
      %p201 = por %p199, %p200
      %p202 = scmp.ne.s32.totalorder %s191, %s194
      %p203 = scmp.eq.s32.totalorder %s28, 1
      %p204 = por %p202, %p203
      %p205 = scmp.ne.s32.totalorder %s194, %s195
      %p206 = scmp.eq.s32.totalorder %s28, 0
      %p207 = por %p205, %p206
      %p208 = scmp.ne.s32.totalorder %s194, %s195
      %p209 = scmp.eq.s32.totalorder %s29, 1
      %p210 = por %p208, %p209
      %p212 = scmp.ne.s32.totalorder %s195, %s211
      %p213 = scmp.eq.s32.totalorder %s29, 0
      %p214 = por %p212, %p213
      %s215 = ssub.s32 %s31, %s38
      %p216 = scmp.eq.s32.totalorder %s215, 0
      %s218 = sadd.s32 %s217, 1
      %s219 = scalar_select %p216, %s217, %s218
      %p222 = pneg %p216
      %p223 = scmp.eq.s32.totalorder %s23, 1
      %p224 = por %p222, %p223
      %p225 = scmp.ne.s32.totalorder %s217, %s220
      %p226 = scmp.eq.s32.totalorder %s23, 0
      %p227 = por %p225, %p226
      %p228 = scmp.ne.s32.totalorder %s217, %s220
      %p229 = scmp.eq.s32.totalorder %s28, 1
      %p230 = por %p228, %p229
      %p231 = scmp.ne.s32.totalorder %s220, %s221
      %p232 = scmp.eq.s32.totalorder %s28, 0
      %p233 = por %p231, %p232
      %p234 = scmp.ne.s32.totalorder %s220, %s221
      %p235 = scmp.eq.s32.totalorder %s29, 1
      %p236 = por %p234, %p235
      %p238 = scmp.ne.s32.totalorder %s221, %s237
      %p239 = scmp.eq.s32.totalorder %s29, 0
      %p240 = por %p238, %p239
      %s241 = ssub.s32 %s31, %s38
      %p242 = scmp.eq.s32.totalorder %s241, 0
      %s244 = sadd.s32 %s243, 1
      %s245 = scalar_select %p242, %s243, %s244
      %p248 = pneg %p242
      %p249 = scmp.eq.s32.totalorder %s23, 1
      %p250 = por %p248, %p249
      %p251 = scmp.ne.s32.totalorder %s243, %s246
      %p252 = scmp.eq.s32.totalorder %s23, 0
      %p253 = por %p251, %p252
      %p254 = scmp.ne.s32.totalorder %s243, %s246
      %p255 = scmp.eq.s32.totalorder %s28, 1
      %p256 = por %p254, %p255
      %p257 = scmp.ne.s32.totalorder %s246, %s247
      %p258 = scmp.eq.s32.totalorder %s28, 0
      %p259 = por %p257, %p258
      %p260 = scmp.ne.s32.totalorder %s246, %s247
      %p261 = scmp.eq.s32.totalorder %s29, 1
      %p262 = por %p260, %p261
      %p264 = scmp.ne.s32.totalorder %s247, %s263
      %p265 = scmp.eq.s32.totalorder %s29, 0
      %p266 = por %p264, %p265
      %s267 = ssub.s32 %s31, %s38
      %p268 = scmp.eq.s32.totalorder %s267, 0
      %s270 = sadd.s32 %s269, 1
      %s271 = scalar_select %p268, %s269, %s270
      %p274 = pneg %p268
      %p275 = scmp.eq.s32.totalorder %s23, 1
      %p276 = por %p274, %p275
      %p277 = scmp.ne.s32.totalorder %s269, %s272
      %p278 = scmp.eq.s32.totalorder %s23, 0
      %p279 = por %p277, %p278
      %p280 = scmp.ne.s32.totalorder %s269, %s272
      %p281 = scmp.eq.s32.totalorder %s28, 1
      %p282 = por %p280, %p281
      %p283 = scmp.ne.s32.totalorder %s272, %s273
      %p284 = scmp.eq.s32.totalorder %s28, 0
      %p285 = por %p283, %p284
      %p286 = scmp.ne.s32.totalorder %s272, %s273
      %p287 = scmp.eq.s32.totalorder %s29, 1
      %p288 = por %p286, %p287
      %p290 = scmp.ne.s32.totalorder %s273, %s289
      %p291 = scmp.eq.s32.totalorder %s29, 0
      %p292 = por %p290, %p291
      %s293 = ssub.s32 %s31, %s38
      %p294 = scmp.eq.s32.totalorder %s293, 0
      %s296 = sadd.s32 %s295, 1
      %s297 = scalar_select %p294, %s295, %s296
      %p300 = pneg %p294
      %p301 = scmp.eq.s32.totalorder %s23, 1
      %p302 = por %p300, %p301
      %p303 = scmp.ne.s32.totalorder %s295, %s298
      %p304 = scmp.eq.s32.totalorder %s23, 0
      %p305 = por %p303, %p304
      %p306 = scmp.ne.s32.totalorder %s295, %s298
      %p307 = scmp.eq.s32.totalorder %s28, 1
      %p308 = por %p306, %p307
      %p309 = scmp.ne.s32.totalorder %s298, %s299
      %p310 = scmp.eq.s32.totalorder %s28, 0
      %p311 = por %p309, %p310
      %p312 = scmp.ne.s32.totalorder %s298, %s299
      %p313 = scmp.eq.s32.totalorder %s29, 1
      %p314 = por %p312, %p313
      %p316 = scmp.ne.s32.totalorder %s299, %s315
      %p317 = scmp.eq.s32.totalorder %s29, 0
      %p318 = por %p316, %p317
      %s319 = ssub.s32 %s31, %s38
      %p320 = scmp.eq.s32.totalorder %s319, 0
      %s322 = sadd.s32 %s321, 1
      %s323 = scalar_select %p320, %s321, %s322
      %p326 = pneg %p320
      %p327 = scmp.eq.s32.totalorder %s23, 1
      %p328 = por %p326, %p327
      %p329 = scmp.ne.s32.totalorder %s321, %s324
      %p330 = scmp.eq.s32.totalorder %s23, 0
      %p331 = por %p329, %p330
      %p332 = scmp.ne.s32.totalorder %s321, %s324
      %p333 = scmp.eq.s32.totalorder %s28, 1
      %p334 = por %p332, %p333
      %p335 = scmp.ne.s32.totalorder %s324, %s325
      %p336 = scmp.eq.s32.totalorder %s28, 0
      %p337 = por %p335, %p336
      %p338 = scmp.ne.s32.totalorder %s324, %s325
      %p339 = scmp.eq.s32.totalorder %s29, 1
      %p340 = por %p338, %p339
      %p342 = scmp.ne.s32.totalorder %s325, %s341
      %p343 = scmp.eq.s32.totalorder %s29, 0
      %p344 = por %p342, %p343
      %s345 = ssub.s32 %s31, %s38
      %p346 = scmp.eq.s32.totalorder %s345, 0
      %s348 = sadd.s32 %s347, 1
      %s349 = scalar_select %p346, %s347, %s348
      %p352 = pneg %p346
      %p353 = scmp.eq.s32.totalorder %s23, 1
      %p354 = por %p352, %p353
      %p355 = scmp.ne.s32.totalorder %s347, %s350
      %p356 = scmp.eq.s32.totalorder %s23, 0
      %p357 = por %p355, %p356
      %p358 = scmp.ne.s32.totalorder %s347, %s350
      %p359 = scmp.eq.s32.totalorder %s28, 1
      %p360 = por %p358, %p359
      %p361 = scmp.ne.s32.totalorder %s350, %s351
      %p362 = scmp.eq.s32.totalorder %s28, 0
      %p363 = por %p361, %p362
      %p364 = scmp.ne.s32.totalorder %s350, %s351
      %p365 = scmp.eq.s32.totalorder %s29, 1
      %p366 = por %p364, %p365
      %p368 = scmp.ne.s32.totalorder %s351, %s367
      %p369 = scmp.eq.s32.totalorder %s29, 0
      %p370 = por %p368, %p369
      %s371 = ssub.s32 %s31, %s38
      %p372 = scmp.eq.s32.totalorder %s371, 0
      %s374 = sadd.s32 %s373, 1
      %s375 = scalar_select %p372, %s373, %s374
      %p378 = pneg %p372
      %p379 = scmp.eq.s32.totalorder %s23, 1
      %p380 = por %p378, %p379
      %p381 = scmp.ne.s32.totalorder %s373, %s376
      %p382 = scmp.eq.s32.totalorder %s23, 0
      %p383 = por %p381, %p382
      %p384 = scmp.ne.s32.totalorder %s373, %s376
      %p385 = scmp.eq.s32.totalorder %s28, 1
      %p386 = por %p384, %p385
      %p387 = scmp.ne.s32.totalorder %s376, %s377
      %p388 = scmp.eq.s32.totalorder %s28, 0
      %p389 = por %p387, %p388
      %p390 = scmp.ne.s32.totalorder %s376, %s377
      %p391 = scmp.eq.s32.totalorder %s29, 1
      %p392 = por %p390, %p391
      %p394 = scmp.ne.s32.totalorder %s377, %s393
      %p395 = scmp.eq.s32.totalorder %s29, 0
      %p396 = por %p394, %p395
      %s397 = ssub.s32 %s31, %s38
      %p398 = scmp.eq.s32.totalorder %s397, 0
      %s400 = sadd.s32 %s399, 1
      %s401 = scalar_select %p398, %s399, %s400
      %p404 = pneg %p398
      %p405 = scmp.eq.s32.totalorder %s23, 1
      %p406 = por %p404, %p405
      %p407 = scmp.ne.s32.totalorder %s399, %s402
      %p408 = scmp.eq.s32.totalorder %s23, 0
      %p409 = por %p407, %p408
      %p410 = scmp.ne.s32.totalorder %s399, %s402
      %p411 = scmp.eq.s32.totalorder %s28, 1
      %p412 = por %p410, %p411
      %p413 = scmp.ne.s32.totalorder %s402, %s403
      %p414 = scmp.eq.s32.totalorder %s28, 0
      %p415 = por %p413, %p414
      %p416 = scmp.ne.s32.totalorder %s402, %s403
      %p417 = scmp.eq.s32.totalorder %s29, 1
      %p418 = por %p416, %p417
      %p420 = scmp.ne.s32.totalorder %s403, %s419
      %p421 = scmp.eq.s32.totalorder %s29, 0
      %p422 = por %p420, %p421
      %s423 = ssub.s32 %s31, %s38
      %p424 = scmp.eq.s32.totalorder %s423, 0
      %s426 = sadd.s32 %s425, 1
      %s427 = scalar_select %p424, %s425, %s426
      %p430 = pneg %p424
      %p431 = scmp.eq.s32.totalorder %s23, 1
      %p432 = por %p430, %p431
      %p433 = scmp.ne.s32.totalorder %s425, %s428
      %p434 = scmp.eq.s32.totalorder %s23, 0
      %p435 = por %p433, %p434
      %p436 = scmp.ne.s32.totalorder %s425, %s428
      %p437 = scmp.eq.s32.totalorder %s28, 1
      %p438 = por %p436, %p437
      %p439 = scmp.ne.s32.totalorder %s428, %s429
      %p440 = scmp.eq.s32.totalorder %s28, 0
      %p441 = por %p439, %p440
      %p442 = scmp.ne.s32.totalorder %s428, %s429
      %p443 = scmp.eq.s32.totalorder %s29, 1
      %p444 = por %p442, %p443
      %p446 = scmp.ne.s32.totalorder %s429, %s445
      %p447 = scmp.eq.s32.totalorder %s29, 0
      %p448 = por %p446, %p447
      %s449 = ssub.s32 %s30, %s42
      %p450 = scmp.eq.s32.totalorder %s449, 0
      %s452 = sadd.s32 %s451, 1
      %s453 = scalar_select %p450, %s451, %s452
      %p456 = pneg %p450
      %p457 = scmp.eq.s32.totalorder %s23, 1
      %p458 = por %p456, %p457
      %p459 = scmp.ne.s32.totalorder %s451, %s454
      %p460 = scmp.eq.s32.totalorder %s23, 0
      %p461 = por %p459, %p460
      %p462 = scmp.ne.s32.totalorder %s451, %s454
      %p463 = scmp.eq.s32.totalorder %s28, 1
      %p464 = por %p462, %p463
      %p465 = scmp.ne.s32.totalorder %s454, %s455
      %p466 = scmp.eq.s32.totalorder %s28, 0
      %p467 = por %p465, %p466
      %p468 = scmp.ne.s32.totalorder %s454, %s455
      %p469 = scmp.eq.s32.totalorder %s29, 1
      %p470 = por %p468, %p469
      %p472 = scmp.ne.s32.totalorder %s455, %s471
      %p473 = scmp.eq.s32.totalorder %s29, 0
      %p474 = por %p472, %p473
      %p475 = scmp.le.s32.totalorder 1, %s23
      %p476 = scmp.lt.s32.totalorder %s23, 3
      %p477 = pnand %p475, %p476
      %p478 = pneg %p477
      // Predicated region
      $region9: #{encoder_stack_forward.1} parent=5 // pred_check
        _
      $region10: #{encoder_stack_forward.1} parent=5 // pred_check_branch
        %480 = sbr.rel (%p477) target = $region12
      $region11: #{encoder_stack_forward.1} parent=5 // pred_region
        %s481 = ssub.s32 %s23, 1
        // Predicated region
        $region13: #{encoder_stack_forward.1} parent=11 // pred_check
          %p482 = pneg %p61
        $region14: #{encoder_stack_forward.1} parent=11 // pred_check_branch
          %484 = sbr.rel (%p482) target = $region16
        $region15: #{encoder_stack_forward.1} parent=11 // pred_region
          %s485 = smul.u32 2, %s32
          %p486 = scmp.lt.s32.totalorder %s485, 1
          %s487 = scalar_select %p486, %s485, 1
          %s488 = smul.addr %s487, 8
          %s489 = scalar_lea.vmem %s0, %s488
          %s490 = smul.u32 2, %s32
        $region16: #{encoder_stack_forward.1} parent=11 // pred_fallthru
          _
        // Predicated region
        $region17: #{encoder_stack_forward.1} parent=11 // pred_check
          %p491 = pneg %p87
        $region18: #{encoder_stack_forward.1} parent=11 // pred_check_branch
          %493 = sbr.rel (%p491) target = $region20
        $region19: #{encoder_stack_forward.1} parent=11 // pred_region
          %s494 = smul.u32 2, %s32
          %p495 = scmp.lt.s32.totalorder %s494, 1
          %s496 = scalar_select %p495, %s494, 1
          %s497 = scalar_lea.vmem %s1, %s496
          %s498 = smul.u32 2, %s32
        $region20: #{encoder_stack_forward.1} parent=11 // pred_fallthru
          _
        // Predicated region
        $region21: #{encoder_stack_forward.1} parent=11 // pred_check
          %p499 = pneg %p108
        $region22: #{encoder_stack_forward.1} parent=11 // pred_check_branch
          %501 = sbr.rel (%p499) target = $region24
        $region23: #{encoder_stack_forward.1} parent=11 // pred_region
          _
        $region24: #{encoder_stack_forward.1} parent=11 // pred_fallthru
          _
        // Predicated region
        $region25: #{encoder_stack_forward.1} parent=11 // pred_check
          %p502 = pneg %p129
        $region26: #{encoder_stack_forward.1} parent=11 // pred_check_branch
          %504 = sbr.rel (%p502) target = $region28
        $region27: #{encoder_stack_forward.1} parent=11 // pred_region
          _
        $region28: #{encoder_stack_forward.1} parent=11 // pred_fallthru
          _
      $region12: #{encoder_stack_forward.1} parent=5 // pred_fallthru
        _
      %p505 = scmp.lt.s32.totalorder %s23, 2
      // Predicated region
      $region29: #{encoder_stack_forward.1} parent=5 // pred_check
        %p506 = pneg %p505
      $region30: #{encoder_stack_forward.1} parent=5 // pred_check_branch
        %508 = sbr.rel (%p506) target = $region32
      $region31: #{encoder_stack_forward.1} parent=5 // pred_region
        // Predicated region
        $region33: #{encoder_stack_forward.1} parent=31 // pred_check
          %p509 = pneg %p149
        $region34: #{encoder_stack_forward.1} parent=31 // pred_check_branch
          %511 = sbr.rel (%p509) target = $region36
        $region35: #{encoder_stack_forward.1} parent=31 // pred_region
          %p512 = scmp.lt.s32.totalorder %s31, 1
          %s513 = scalar_select %p512, %s31, 1
          %s514 = smul.addr %s513, 4
          %s515 = smul.addr %s514, 8
          %s516 = scalar_lea.vmem %s4, %s515
        $region36: #{encoder_stack_forward.1} parent=31 // pred_fallthru
          _
        // Predicated region
        $region37: #{encoder_stack_forward.1} parent=31 // pred_check
          %p517 = pneg %p175
        $region38: #{encoder_stack_forward.1} parent=31 // pred_check_branch
          %519 = sbr.rel (%p517) target = $region40
        $region39: #{encoder_stack_forward.1} parent=31 // pred_region
          %p520 = scmp.lt.s32.totalorder %s31, 1
          %s521 = scalar_select %p520, %s31, 1
          %s522 = scalar_lea.vmem %s5, %s521
        $region40: #{encoder_stack_forward.1} parent=31 // pred_fallthru
          _
        // Predicated region
        $region41: #{encoder_stack_forward.1} parent=31 // pred_check
          %p523 = pneg %p201
        $region42: #{encoder_stack_forward.1} parent=31 // pred_check_branch
          %525 = sbr.rel (%p523) target = $region44
        $region43: #{encoder_stack_forward.1} parent=31 // pred_region
          %p526 = scmp.lt.s32.totalorder %s31, 1
          %s527 = scalar_select %p526, %s31, 1
          %s528 = smul.addr %s527, 4
          %s529 = smul.addr %s528, 8
          %s530 = scalar_lea.vmem %s6, %s529
        $region44: #{encoder_stack_forward.1} parent=31 // pred_fallthru
          _
        // Predicated region
        $region45: #{encoder_stack_forward.1} parent=31 // pred_check
          %p531 = pneg %p227
        $region46: #{encoder_stack_forward.1} parent=31 // pred_check_branch
          %533 = sbr.rel (%p531) target = $region48
        $region47: #{encoder_stack_forward.1} parent=31 // pred_region
          %p534 = scmp.lt.s32.totalorder %s31, 1
          %s535 = scalar_select %p534, %s31, 1
          %s536 = scalar_lea.vmem %s7, %s535
        $region48: #{encoder_stack_forward.1} parent=31 // pred_fallthru
          _
        // Predicated region
        $region49: #{encoder_stack_forward.1} parent=31 // pred_check
          %p537 = pneg %p253
        $region50: #{encoder_stack_forward.1} parent=31 // pred_check_branch
          %539 = sbr.rel (%p537) target = $region52
        $region51: #{encoder_stack_forward.1} parent=31 // pred_region
          %p540 = scmp.lt.s32.totalorder %s31, 1
          %s541 = scalar_select %p540, %s31, 1
          %s542 = scalar_lea.vmem %s8, %s541
        $region52: #{encoder_stack_forward.1} parent=31 // pred_fallthru
          _
        // Predicated region
        $region53: #{encoder_stack_forward.1} parent=31 // pred_check
          %p543 = pneg %p279
        $region54: #{encoder_stack_forward.1} parent=31 // pred_check_branch
          %545 = sbr.rel (%p543) target = $region56
        $region55: #{encoder_stack_forward.1} parent=31 // pred_region
          %p546 = scmp.lt.s32.totalorder %s31, 1
          %s547 = scalar_select %p546, %s31, 1
          %s548 = scalar_lea.vmem %s9, %s547
        $region56: #{encoder_stack_forward.1} parent=31 // pred_fallthru
          _
        // Predicated region
        $region57: #{encoder_stack_forward.1} parent=31 // pred_check
          %p549 = pneg %p305
        $region58: #{encoder_stack_forward.1} parent=31 // pred_check_branch
          %551 = sbr.rel (%p549) target = $region60
        $region59: #{encoder_stack_forward.1} parent=31 // pred_region
          %p552 = scmp.lt.s32.totalorder %s31, 1
          %s553 = scalar_select %p552, %s31, 1
          %s554 = smul.addr %s553, 4
          %s555 = smul.addr %s554, 8
          %s556 = scalar_lea.vmem %s10, %s555
        $region60: #{encoder_stack_forward.1} parent=31 // pred_fallthru
          _
        // Predicated region
        $region61: #{encoder_stack_forward.1} parent=31 // pred_check
          %p557 = pneg %p331
        $region62: #{encoder_stack_forward.1} parent=31 // pred_check_branch
          %559 = sbr.rel (%p557) target = $region64
        $region63: #{encoder_stack_forward.1} parent=31 // pred_region
          %p560 = scmp.lt.s32.totalorder %s31, 1
          %s561 = scalar_select %p560, %s31, 1
          %s562 = scalar_lea.vmem %s11, %s561
        $region64: #{encoder_stack_forward.1} parent=31 // pred_fallthru
          _
        // Predicated region
        $region65: #{encoder_stack_forward.1} parent=31 // pred_check
          %p563 = pneg %p357
        $region66: #{encoder_stack_forward.1} parent=31 // pred_check_branch
          %565 = sbr.rel (%p563) target = $region68
        $region67: #{encoder_stack_forward.1} parent=31 // pred_region
          %p566 = scmp.lt.s32.totalorder %s31, 1
          %s567 = scalar_select %p566, %s31, 1
          %s568 = smul.addr %s567, 16
          %s569 = smul.addr %s568, 8
          %s570 = scalar_lea.vmem %s12, %s569
        $region68: #{encoder_stack_forward.1} parent=31 // pred_fallthru
          _
        // Predicated region
        $region69: #{encoder_stack_forward.1} parent=31 // pred_check
          %p571 = pneg %p383
        $region70: #{encoder_stack_forward.1} parent=31 // pred_check_branch
          %573 = sbr.rel (%p571) target = $region72
        $region71: #{encoder_stack_forward.1} parent=31 // pred_region
          %p574 = scmp.lt.s32.totalorder %s31, 1
          %s575 = scalar_select %p574, %s31, 1
          %s576 = scalar_lea.vmem %s13, %s575
        $region72: #{encoder_stack_forward.1} parent=31 // pred_fallthru
          _
        // Predicated region
        $region73: #{encoder_stack_forward.1} parent=31 // pred_check
          %p577 = pneg %p409
        $region74: #{encoder_stack_forward.1} parent=31 // pred_check_branch
          %579 = sbr.rel (%p577) target = $region76
        $region75: #{encoder_stack_forward.1} parent=31 // pred_region
          %p580 = scmp.lt.s32.totalorder %s31, 1
          %s581 = scalar_select %p580, %s31, 1
          %s582 = scalar_lea.vmem %s14, %s581
        $region76: #{encoder_stack_forward.1} parent=31 // pred_fallthru
          _
        // Predicated region
        $region77: #{encoder_stack_forward.1} parent=31 // pred_check
          %p583 = pneg %p435
        $region78: #{encoder_stack_forward.1} parent=31 // pred_check_branch
          %585 = sbr.rel (%p583) target = $region80
        $region79: #{encoder_stack_forward.1} parent=31 // pred_region
          %p586 = scmp.lt.s32.totalorder %s31, 1
          %s587 = scalar_select %p586, %s31, 1
          %s588 = scalar_lea.vmem %s15, %s587
        $region80: #{encoder_stack_forward.1} parent=31 // pred_fallthru
          _
      $region32: #{encoder_stack_forward.1} parent=5 // pred_fallthru
        _
      %p589 = scmp.le.s32.totalorder 1, %s23
      %p590 = scmp.lt.s32.totalorder %s23, 3
      %p591 = pnand %p589, %p590
      %p592 = pneg %p591
      // Predicated region
      $region81: #{encoder_stack_forward.1} parent=5 // pred_check
        _
      $region82: #{encoder_stack_forward.1} parent=5 // pred_check_branch
        %594 = sbr.rel (%p591) target = $region84
      $region83: #{encoder_stack_forward.1} parent=5 // pred_region
        %s595 = ssub.s32 %s23, 1
        %s596 = smul.u32 2, %s32
        %p597 = scmp.lt.s32.totalorder %s596, 1
        %s598 = scalar_select %p597, %s596, 1
        %s599 = smul.addr %s598, 8
        %s600 = scalar_lea.vmem %s0, %s599
        %p601 = pneg %p61
        %p602 = pneg %p58
        %s603 = smul.u32 2, %s32
        %p604 = scmp.lt.s32.totalorder %s603, 1
        %s605 = scalar_select %p604, %s603, 1
        %s606 = scalar_lea.vmem %s1, %s605
        %p607 = pneg %p87
        %p608 = pneg %p84
        %p609 = pneg %p108
        %p610 = pneg %p105
        %p611 = pneg %p129
        %p612 = pneg %p126
        %p613 = scmp.lt.s32.totalorder %s33, 1
        %s614 = scalar_select %p613, %s33, 1
        %s615 = smul.addr %s614, 4
        %s616 = smul.addr %s615, 8
        %s617 = scalar_lea.vmem %s4, %s616
        %p618 = pneg %p155
        %p619 = pneg %p152
        %p620 = scmp.lt.s32.totalorder %s33, 1
        %s621 = scalar_select %p620, %s33, 1
        %s622 = scalar_lea.vmem %s5, %s621
        %p623 = pneg %p181
        %p624 = pneg %p178
        %p625 = scmp.lt.s32.totalorder %s33, 1
        %s626 = scalar_select %p625, %s33, 1
        %s627 = smul.addr %s626, 4
        %s628 = smul.addr %s627, 8
        %s629 = scalar_lea.vmem %s6, %s628
        %p630 = pneg %p207
        %p631 = pneg %p204
        %p632 = scmp.lt.s32.totalorder %s33, 1
        %s633 = scalar_select %p632, %s33, 1
        %s634 = scalar_lea.vmem %s7, %s633
        %p635 = pneg %p233
        %p636 = pneg %p230
        %p637 = scmp.lt.s32.totalorder %s33, 1
        %s638 = scalar_select %p637, %s33, 1
        %s639 = scalar_lea.vmem %s8, %s638
        %p640 = pneg %p259
        %p641 = pneg %p256
        %p642 = scmp.lt.s32.totalorder %s33, 1
        %s643 = scalar_select %p642, %s33, 1
        %s644 = scalar_lea.vmem %s9, %s643
        %p645 = pneg %p285
        %p646 = pneg %p282
        %p647 = scmp.lt.s32.totalorder %s33, 1
        %s648 = scalar_select %p647, %s33, 1
        %s649 = smul.addr %s648, 4
        %s650 = smul.addr %s649, 8
        %s651 = scalar_lea.vmem %s10, %s650
        %p652 = pneg %p311
        %p653 = pneg %p308
        %p654 = scmp.lt.s32.totalorder %s33, 1
        %s655 = scalar_select %p654, %s33, 1
        %s656 = scalar_lea.vmem %s11, %s655
        %p657 = pneg %p337
        %p658 = pneg %p334
        %p659 = scmp.lt.s32.totalorder %s33, 1
        %s660 = scalar_select %p659, %s33, 1
        %s661 = smul.addr %s660, 16
        %s662 = smul.addr %s661, 8
        %s663 = scalar_lea.vmem %s12, %s662
        %p664 = pneg %p363
        %p665 = pneg %p360
        %p666 = scmp.lt.s32.totalorder %s33, 1
        %s667 = scalar_select %p666, %s33, 1
        %s668 = scalar_lea.vmem %s13, %s667
        %p669 = pneg %p389
        %p670 = pneg %p386
        %p671 = scmp.lt.s32.totalorder %s33, 1
        %s672 = scalar_select %p671, %s33, 1
        %s673 = scalar_lea.vmem %s14, %s672
        %p674 = pneg %p415
        %p675 = pneg %p412
        %p676 = scmp.lt.s32.totalorder %s33, 1
        %s677 = scalar_select %p676, %s33, 1
        %s678 = scalar_lea.vmem %s15, %s677
        %p679 = pneg %p441
        %p680 = pneg %p438
        %p681 = pneg %p467
        %p682 = pneg %p464
        %s683 = smul.u32 2, %s32
        %p684 = scmp.lt.s32.totalorder %s683, 1
        %s685 = scalar_select %p684, %s683, 1
        %s686 = smul.addr %s685, 8
        %s687 = scalar_lea.vmem %s0, %s686
        %s688 = smul.u32 2, %s32
        %s689 = smul.u32 2, %s32
        %p690 = scmp.lt.s32.totalorder %s689, 1
        %s691 = scalar_select %p690, %s689, 1
        %s692 = scalar_lea.vmem %s1, %s691
        %s693 = smul.u32 2, %s32
        %p694 = scmp.lt.s32.totalorder %s33, 1
        %s695 = scalar_select %p694, %s33, 1
        %s696 = smul.addr %s695, 4
        %s697 = smul.addr %s696, 8
        %s698 = scalar_lea.vmem %s4, %s697
        %p699 = scmp.lt.s32.totalorder %s33, 1
        %s700 = scalar_select %p699, %s33, 1
        %s701 = scalar_lea.vmem %s5, %s700
        %p702 = scmp.lt.s32.totalorder %s33, 1
        %s703 = scalar_select %p702, %s33, 1
        %s704 = smul.addr %s703, 4
        %s705 = smul.addr %s704, 8
        %s706 = scalar_lea.vmem %s6, %s705
        %p707 = scmp.lt.s32.totalorder %s33, 1
        %s708 = scalar_select %p707, %s33, 1
        %s709 = scalar_lea.vmem %s7, %s708
        %p710 = scmp.lt.s32.totalorder %s33, 1
        %s711 = scalar_select %p710, %s33, 1
        %s712 = scalar_lea.vmem %s8, %s711
        %p713 = scmp.lt.s32.totalorder %s33, 1
        %s714 = scalar_select %p713, %s33, 1
        %s715 = scalar_lea.vmem %s9, %s714
        %p716 = scmp.lt.s32.totalorder %s33, 1
        %s717 = scalar_select %p716, %s33, 1
        %s718 = smul.addr %s717, 4
        %s719 = smul.addr %s718, 8
        %s720 = scalar_lea.vmem %s10, %s719
        %p721 = scmp.lt.s32.totalorder %s33, 1
        %s722 = scalar_select %p721, %s33, 1
        %s723 = scalar_lea.vmem %s11, %s722
        %p724 = scmp.lt.s32.totalorder %s33, 1
        %s725 = scalar_select %p724, %s33, 1
        %s726 = smul.addr %s725, 16
        %s727 = smul.addr %s726, 8
        %s728 = scalar_lea.vmem %s12, %s727
        %p729 = scmp.lt.s32.totalorder %s33, 1
        %s730 = scalar_select %p729, %s33, 1
        %s731 = scalar_lea.vmem %s13, %s730
        %p732 = scmp.lt.s32.totalorder %s33, 1
        %s733 = scalar_select %p732, %s33, 1
        %s734 = scalar_lea.vmem %s14, %s733
        %p735 = scmp.lt.s32.totalorder %s33, 1
        %s736 = scalar_select %p735, %s33, 1
        %s737 = scalar_lea.vmem %s15, %s736
        %s738 = smul.u32 2, %s32
        %p739 = scmp.eq.s32.totalorder %s33, 0
        // Predicated region
        $region85: #{encoder_stack_forward.1} parent=83 // pred_check
          %p740 = pneg %p739
        $region86: #{encoder_stack_forward.1} parent=83 // pred_check_branch
          %742 = sbr.rel (%p740) target = $region88
        $region87: #{encoder_stack_forward.1} parent=83 // pred_region
          %v743 = vld [vmem:[%s687] sm:$0xff]
          %v744 = vld [vmem:[%s687 + $0x8] sm:$0xff]
          %v745 = vld [vmem:[%s2] sm:$0x1]
          %v746 = vld [vmem:[%s3] sm:$0x1]
          %vm747 = vcmask 261120
          %v748 = vsel %vm747, %v743, 0.0
          %749 = vadd.xlane.f32.xlu0 %v748
          %v750 = vpop.xlane.xlu0 %749
          %v751 = vsel %vm747, %v744, 0.0
          %752 = vadd.xlane.f32.xlu0 %v751
          %v753 = vpop.xlane.xlu0 %752
          %v754 = vrcp.pop 32.0
          %v755 = vmul.f32 32.0, %v754
          %v756 = vsub.f32 1.0, %v755
          %v757 = vmul.f32 %v754, %v756
          %v758 = vadd.f32 %v754, %v757
          %vm759 = vweird.f32 %v754
          %v760 = vsel %vm759, %v754, %v758
          %v761 = vmul.f32 %v750, %v760
          %v762 = vmul.f32 %v753, %v760
          %v763 = vsub.f32 %v743, %v761
          %v764 = vsub.f32 %v744, %v762
          %v765 = vmul.f32 %v763, %v763
          %v766 = vmul.f32 %v764, %v764
          %v767 = vsel %vm747, %v765, 0.0
          %768 = vadd.xlane.f32.xlu0 %v767
          %v769 = vpop.xlane.xlu0 %768
          %v770 = vsel %vm747, %v766, 0.0
          %771 = vadd.xlane.f32.xlu0 %v770
          %v772 = vpop.xlane.xlu0 %771
          %v773 = vmul.f32 %v769, %v760
          %v774 = vmul.f32 %v772, %v760
          %v775 = vadd.f32 %v773, 1e-12
          %v776 = vadd.f32 %v774, 1e-12
          %v777 = vrsqrt.pop %v775
          %v778 = vmul.f32 %v777, %v775
          %v779 = vmul.f32 %v778, %v777
          %v780 = vmul.f32 0.5, %v779
          %v781 = vsub.f32 1.5, %v780
          %v782 = vmul.f32 %v777, %v781
          %vm783 = vweird.f32 %v775
          %vm784 = vweird.f32 %v777
          %vm785 = vmor %vm783, %vm784
          %v786 = vsel %vm785, %v777, %v782
          %v787 = vrsqrt.pop %v776
          %v788 = vmul.f32 %v787, %v776
          %v789 = vmul.f32 %v788, %v787
          %v790 = vmul.f32 0.5, %v789
          %v791 = vsub.f32 1.5, %v790
          %v792 = vmul.f32 %v787, %v791
          %vm793 = vweird.f32 %v776
          %vm794 = vweird.f32 %v787
          %vm795 = vmor %vm793, %vm794
          %v796 = vsel %vm795, %v787, %v792
          %v797 = vmul.f32 %v763, %v786
          %v798 = vmul.f32 %v764, %v796
          %v800 = vperm.slane %v745, 0
          %v802 = vmul.f32 %v800, %v797
          %v803 = vmul.f32 %v800, %v798
          %v805 = vperm.slane %v746, 0
          %v807 = vadd.f32 %v802, %v805
          %v808 = vadd.f32 %v803, %v805
          %809 = vst.msk [vmem:[#allocation2] sm:$0xff] %vm747, %v807
          %810 = vst.msk [vmem:[#allocation2 + $0x8] sm:$0xff] %vm747, %v808
        $region88: #{encoder_stack_forward.1} parent=83 // pred_fallthru
          _
        %v811 = vld [vmem:[#allocation2] sm:$0xff]
        %v812 = vld [vmem:[#allocation2 + $0x8] sm:$0xff]
        %v813 = vld [vmem:[%s698] sm:$0xff]
        %v814 = vld [vmem:[%s698 + $0x8] sm:$0xff]
        %v815 = vld [vmem:[%s698 + $0x10] sm:$0xff]
        %v816 = vld [vmem:[%s698 + $0x18] sm:$0xff]
        %v817 = vld [vmem:[%s701] sm:$0x1]
        %v819 = vperm.slane %v817, 0
        %vm821 = vcmask 261120
        %v823 = vsel %vm821, %v811, 0
        %v826 = vsel %vm821, %v812, 0
        %828 = vmatpush.msra.mxu0 0.0
        %829 = vmatpush.msra.mxu0 0.0
        %830 = vmatpush.msra.mxu0 0.0
        %831 = vmatpush.msra.mxu0 0.0
        %832 = vmatpush.msra.mxu0 0.0
        %833 = vmatpush.msra.mxu0 0.0
        %834 = vmatpush.msra.mxu0 0.0
        %835 = vmatpush.msra.mxu0 0.0
        %836 = vmatpush.msra.mxu0 0.0
        %837 = vmatpush.msra.mxu0 0.0
        %838 = vmatpush.msra.mxu0 0.0
        %839 = vmatpush.msra.mxu0 0.0
        %840 = vmatpush.msra.mxu0 %v816
        %841 = vmatpush.msra.mxu0 %v815
        %842 = vmatpush.msra.mxu0 %v814
        %843 = vmatpush.msra.mxu0 %v813
        %844 = vmatmul.f32.gmra.mxu0 %v823
        %v845 = vpop.f32.mrf.mxu0
        %v846 = vadd.f32 %v819, %v845
        %847 = vmatmul.f32.gmra.mxu0 %v826
        %v848 = vpop.f32.mrf.mxu0
        %v849 = vadd.f32 %v819, %v848
        %850 = vdwg.mxu0
        %v851 = vmul.f32 %v846, 0.35355338
        %v852 = vmul.f32 %v849, 0.35355338
        %v853 = vld [vmem:[%s692] sm:$0x1]
        %v854 = vld [vmem:[%s692 + $0x1] sm:$0x1]
        %856 = vrot.lane.b32.xlu0 %v851, 120
        %v857 = vpop.permute.xlu0 %856
        %858 = vrot.lane.b32.xlu0 %v851, 112
        %v859 = vpop.permute.xlu0 %858
        %860 = vrot.lane.b32.xlu0 %v851, 104
        %v861 = vpop.permute.xlu0 %860
        %863 = vrot.lane.b32.xlu0 %v846, 120
        %v864 = vpop.permute.xlu0 %863
        %865 = vrot.lane.b32.xlu0 %v846, 112
        %v866 = vpop.permute.xlu0 %865
        %867 = vrot.lane.b32.xlu0 %v846, 104
        %v868 = vpop.permute.xlu0 %867
        %v870 = vperm.slane %v853, 0
        %872 = vrot.lane.b32.xlu0 %v846, 96
        %v873 = vpop.permute.xlu0 %872
        %vm874 = vcmask 64512
        %v875 = vsel %vm874, %v851, 0
        %v877 = vsel %vm874, %v873, 0
        %879 = vmatpush.xpose.msra.mxu0 0.0
        %880 = vmatpush.xpose.msra.mxu0 0.0
        %881 = vmatpush.xpose.msra.mxu0 0.0
        %882 = vmatpush.xpose.msra.mxu0 0.0
        %883 = vmatpush.xpose.msra.mxu0 0.0
        %884 = vmatpush.xpose.msra.mxu0 0.0
        %885 = vmatpush.xpose.msra.mxu0 0.0
        %886 = vmatpush.xpose.msra.mxu0 0.0
        %887 = vmatpush.xpose.msra.mxu0 0.0
        %888 = vmatpush.xpose.msra.mxu0 0.0
        %889 = vmatpush.xpose.msra.mxu0 0.0
        %890 = vmatpush.xpose.msra.mxu0 0.0
        %891 = vmatpush.xpose.msra.mxu0 0.0
        %892 = vmatpush.xpose.msra.mxu0 0.0
        %893 = vmatpush.xpose.msra.mxu0 0.0
        %894 = vmatpush.xpose.msra.mxu0 %v877
        %895 = vmatmul.f32.gmra.mxu0 %v875
        %v896 = vpop.f32.mrf.mxu0
        %v897 = vadd.f32 %v870, %v896
        %898 = vdwg.mxu0
        %899 = vrot.lane.b32.xlu0 %v864, 96
        %v900 = vpop.permute.xlu0 %899
        %v901 = vsel %vm874, %v857, 0
        %v903 = vsel %vm874, %v900, 0
        %905 = vmatpush.xpose.msra.mxu0 0.0
        %906 = vmatpush.xpose.msra.mxu0 0.0
        %907 = vmatpush.xpose.msra.mxu0 0.0
        %908 = vmatpush.xpose.msra.mxu0 0.0
        %909 = vmatpush.xpose.msra.mxu0 0.0
        %910 = vmatpush.xpose.msra.mxu0 0.0
        %911 = vmatpush.xpose.msra.mxu0 0.0
        %912 = vmatpush.xpose.msra.mxu0 0.0
        %913 = vmatpush.xpose.msra.mxu0 0.0
        %914 = vmatpush.xpose.msra.mxu0 0.0
        %915 = vmatpush.xpose.msra.mxu0 0.0
        %916 = vmatpush.xpose.msra.mxu0 0.0
        %917 = vmatpush.xpose.msra.mxu0 0.0
        %918 = vmatpush.xpose.msra.mxu0 0.0
        %919 = vmatpush.xpose.msra.mxu0 0.0
        %920 = vmatpush.xpose.msra.mxu0 %v903
        %921 = vmatmul.f32.gmra.mxu0 %v901
        %v922 = vpop.f32.mrf.mxu0
        %v923 = vadd.f32 %v870, %v922
        %924 = vdwg.mxu0
        %925 = vrot.lane.b32.xlu0 %v866, 96
        %v926 = vpop.permute.xlu0 %925
        %v927 = vsel %vm874, %v859, 0
        %v929 = vsel %vm874, %v926, 0
        %931 = vmatpush.xpose.msra.mxu0 0.0
        %932 = vmatpush.xpose.msra.mxu0 0.0
        %933 = vmatpush.xpose.msra.mxu0 0.0
        %934 = vmatpush.xpose.msra.mxu0 0.0
        %935 = vmatpush.xpose.msra.mxu0 0.0
        %936 = vmatpush.xpose.msra.mxu0 0.0
        %937 = vmatpush.xpose.msra.mxu0 0.0
        %938 = vmatpush.xpose.msra.mxu0 0.0
        %939 = vmatpush.xpose.msra.mxu0 0.0
        %940 = vmatpush.xpose.msra.mxu0 0.0
        %941 = vmatpush.xpose.msra.mxu0 0.0
        %942 = vmatpush.xpose.msra.mxu0 0.0
        %943 = vmatpush.xpose.msra.mxu0 0.0
        %944 = vmatpush.xpose.msra.mxu0 0.0
        %945 = vmatpush.xpose.msra.mxu0 0.0
        %946 = vmatpush.xpose.msra.mxu0 %v929
        %947 = vmatmul.f32.gmra.mxu0 %v927
        %v948 = vpop.f32.mrf.mxu0
        %v949 = vadd.f32 %v870, %v948
        %950 = vdwg.mxu0
        %951 = vrot.lane.b32.xlu0 %v868, 96
        %v952 = vpop.permute.xlu0 %951
        %v953 = vsel %vm874, %v861, 0
        %v955 = vsel %vm874, %v952, 0
        %957 = vmatpush.xpose.msra.mxu0 0.0
        %958 = vmatpush.xpose.msra.mxu0 0.0
        %959 = vmatpush.xpose.msra.mxu0 0.0
        %960 = vmatpush.xpose.msra.mxu0 0.0
        %961 = vmatpush.xpose.msra.mxu0 0.0
        %962 = vmatpush.xpose.msra.mxu0 0.0
        %963 = vmatpush.xpose.msra.mxu0 0.0
        %964 = vmatpush.xpose.msra.mxu0 0.0
        %965 = vmatpush.xpose.msra.mxu0 0.0
        %966 = vmatpush.xpose.msra.mxu0 0.0
        %967 = vmatpush.xpose.msra.mxu0 0.0
        %968 = vmatpush.xpose.msra.mxu0 0.0
        %969 = vmatpush.xpose.msra.mxu0 0.0
        %970 = vmatpush.xpose.msra.mxu0 0.0
        %971 = vmatpush.xpose.msra.mxu0 0.0
        %972 = vmatpush.xpose.msra.mxu0 %v955
        %973 = vmatmul.f32.gmra.mxu0 %v953
        %v974 = vpop.f32.mrf.mxu0
        %v975 = vadd.f32 %v870, %v974
        %976 = vdwg.mxu0
        %v977 = vsel %vm874, %v897, -inf
        %978 = vmax.xlane.f32.xlu0 %v977
        %v979 = vpop.xlane.xlu0 %978
        %v980 = vsel %vm874, %v923, -inf
        %981 = vmax.xlane.f32.xlu0 %v980
        %v982 = vpop.xlane.xlu0 %981
        %v983 = vsel %vm874, %v949, -inf
        %984 = vmax.xlane.f32.xlu0 %v983
        %v985 = vpop.xlane.xlu0 %984
        %v986 = vsel %vm874, %v975, -inf
        %987 = vmax.xlane.f32.xlu0 %v986
        %v988 = vpop.xlane.xlu0 %987
        %v989 = vsub.f32 %v897, %v979
        %v990 = vsub.f32 %v923, %v982
        %v991 = vsub.f32 %v949, %v985
        %v992 = vsub.f32 %v975, %v988
        %v993 = vmul.f32 %v989, 1.442695
        %v994 = vpow.pop %v993
        %v995 = vmul.f32 %v990, 1.442695
        %v996 = vpow.pop %v995
        %v997 = vmul.f32 %v991, 1.442695
        %v998 = vpow.pop %v997
        %v999 = vmul.f32 %v992, 1.442695
        %v1000 = vpow.pop %v999
        %v1001 = vsel %vm874, %v994, 0.0
        %1002 = vadd.xlane.f32.xlu0 %v1001
        %v1003 = vpop.xlane.xlu0 %1002
        %v1004 = vsel %vm874, %v996, 0.0
        %1005 = vadd.xlane.f32.xlu0 %v1004
        %v1006 = vpop.xlane.xlu0 %1005
        %v1007 = vsel %vm874, %v998, 0.0
        %1008 = vadd.xlane.f32.xlu0 %v1007
        %v1009 = vpop.xlane.xlu0 %1008
        %v1010 = vsel %vm874, %v1000, 0.0
        %1011 = vadd.xlane.f32.xlu0 %v1010
        %v1012 = vpop.xlane.xlu0 %1011
        %v1013 = vrcp.pop %v1003
        %v1014 = vmul.f32 %v1003, %v1013
        %v1015 = vsub.f32 1.0, %v1014
        %v1016 = vmul.f32 %v1013, %v1015
        %v1017 = vadd.f32 %v1013, %v1016
        %vm1018 = vweird.f32 %v1003
        %vm1019 = vweird.f32 %v1013
        %vm1020 = vmor %vm1018, %vm1019
        %v1021 = vsel %vm1020, %v1013, %v1017
        %v1022 = vand.u32 2147483647, %v1003
        %vm1023 = vcmp.eq.f32.partialorder %v1022, 8.507059e+37
        %v1024 = vand.u32 %v1003, 2147483648
        %v1025 = vor.u32 1.1754944e-38, %v1024
        %v1026 = vsel %vm1023, %v1025, %v1021
        %v1027 = vmul.f32 %v994, %v1026
        %v1028 = vrcp.pop %v1006
        %v1029 = vmul.f32 %v1006, %v1028
        %v1030 = vsub.f32 1.0, %v1029
        %v1031 = vmul.f32 %v1028, %v1030
        %v1032 = vadd.f32 %v1028, %v1031
        %vm1033 = vweird.f32 %v1006
        %vm1034 = vweird.f32 %v1028
        %vm1035 = vmor %vm1033, %vm1034
        %v1036 = vsel %vm1035, %v1028, %v1032
        %v1037 = vand.u32 2147483647, %v1006
        %vm1038 = vcmp.eq.f32.partialorder %v1037, 8.507059e+37
        %v1039 = vand.u32 %v1006, 2147483648
        %v1040 = vor.u32 1.1754944e-38, %v1039
        %v1041 = vsel %vm1038, %v1040, %v1036
        %v1042 = vmul.f32 %v996, %v1041
        %v1043 = vrcp.pop %v1009
        %v1044 = vmul.f32 %v1009, %v1043
        %v1045 = vsub.f32 1.0, %v1044
        %v1046 = vmul.f32 %v1043, %v1045
        %v1047 = vadd.f32 %v1043, %v1046
        %vm1048 = vweird.f32 %v1009
        %vm1049 = vweird.f32 %v1043
        %vm1050 = vmor %vm1048, %vm1049
        %v1051 = vsel %vm1050, %v1043, %v1047
        %v1052 = vand.u32 2147483647, %v1009
        %vm1053 = vcmp.eq.f32.partialorder %v1052, 8.507059e+37
        %v1054 = vand.u32 %v1009, 2147483648
        %v1055 = vor.u32 1.1754944e-38, %v1054
        %v1056 = vsel %vm1053, %v1055, %v1051
        %v1057 = vmul.f32 %v998, %v1056
        %v1058 = vrcp.pop %v1012
        %v1059 = vmul.f32 %v1012, %v1058
        %v1060 = vsub.f32 1.0, %v1059
        %v1061 = vmul.f32 %v1058, %v1060
        %v1062 = vadd.f32 %v1058, %v1061
        %vm1063 = vweird.f32 %v1012
        %vm1064 = vweird.f32 %v1058
        %vm1065 = vmor %vm1063, %vm1064
        %v1066 = vsel %vm1065, %v1058, %v1062
        %v1067 = vand.u32 2147483647, %v1012
        %vm1068 = vcmp.eq.f32.partialorder %v1067, 8.507059e+37
        %v1069 = vand.u32 %v1012, 2147483648
        %v1070 = vor.u32 1.1754944e-38, %v1069
        %v1071 = vsel %vm1068, %v1070, %v1066
        %v1072 = vmul.f32 %v1000, %v1071
        %1073 = vrot.lane.b32.xlu0 %v846, 64
        %v1074 = vpop.permute.xlu0 %1073
        %v1077 = vsel %vm874, %v1027, 0
        %1079 = vmatpush.msra.mxu0 0.0
        %1080 = vmatpush.msra.mxu0 0.0
        %1081 = vmatpush.msra.mxu0 0.0
        %1082 = vmatpush.msra.mxu0 0.0
        %1083 = vmatpush.msra.mxu0 0.0
        %1084 = vmatpush.msra.mxu0 0.0
        %1085 = vmatpush.msra.mxu0 0.0
        %1086 = vmatpush.msra.mxu0 0.0
        %1087 = vmatpush.msra.mxu0 0.0
        %1088 = vmatpush.msra.mxu0 0.0
        %1089 = vmatpush.msra.mxu0 0.0
        %1090 = vmatpush.msra.mxu0 0.0
        %1091 = vmatpush.msra.mxu0 0.0
        %1092 = vmatpush.msra.mxu0 0.0
        %1093 = vmatpush.msra.mxu0 0.0
        %1094 = vmatpush.msra.mxu0 %v1074
        %1095 = vmatmul.f32.gmra.mxu0 %v1077
        %v1096 = vpop.f32.mrf.mxu0
        %v1097 = vadd.f32 0.0, %v1096
        %1098 = vdwg.mxu0
        %1099 = vrot.lane.b32.xlu0 %v864, 64
        %v1100 = vpop.permute.xlu0 %1099
        %v1103 = vsel %vm874, %v1042, 0
        %1105 = vmatpush.msra.mxu0 0.0
        %1106 = vmatpush.msra.mxu0 0.0
        %1107 = vmatpush.msra.mxu0 0.0
        %1108 = vmatpush.msra.mxu0 0.0
        %1109 = vmatpush.msra.mxu0 0.0
        %1110 = vmatpush.msra.mxu0 0.0
        %1111 = vmatpush.msra.mxu0 0.0
        %1112 = vmatpush.msra.mxu0 0.0
        %1113 = vmatpush.msra.mxu0 0.0
        %1114 = vmatpush.msra.mxu0 0.0
        %1115 = vmatpush.msra.mxu0 0.0
        %1116 = vmatpush.msra.mxu0 0.0
        %1117 = vmatpush.msra.mxu0 0.0
        %1118 = vmatpush.msra.mxu0 0.0
        %1119 = vmatpush.msra.mxu0 0.0
        %1120 = vmatpush.msra.mxu0 %v1100
        %1121 = vmatmul.f32.gmra.mxu0 %v1103
        %v1122 = vpop.f32.mrf.mxu0
        %v1123 = vadd.f32 0.0, %v1122
        %1124 = vdwg.mxu0
        %1125 = vrot.lane.b32.xlu0 %v866, 64
        %v1126 = vpop.permute.xlu0 %1125
        %v1129 = vsel %vm874, %v1057, 0
        %1131 = vmatpush.msra.mxu0 0.0
        %1132 = vmatpush.msra.mxu0 0.0
        %1133 = vmatpush.msra.mxu0 0.0
        %1134 = vmatpush.msra.mxu0 0.0
        %1135 = vmatpush.msra.mxu0 0.0
        %1136 = vmatpush.msra.mxu0 0.0
        %1137 = vmatpush.msra.mxu0 0.0
        %1138 = vmatpush.msra.mxu0 0.0
        %1139 = vmatpush.msra.mxu0 0.0
        %1140 = vmatpush.msra.mxu0 0.0
        %1141 = vmatpush.msra.mxu0 0.0
        %1142 = vmatpush.msra.mxu0 0.0
        %1143 = vmatpush.msra.mxu0 0.0
        %1144 = vmatpush.msra.mxu0 0.0
        %1145 = vmatpush.msra.mxu0 0.0
        %1146 = vmatpush.msra.mxu0 %v1126
        %1147 = vmatmul.f32.gmra.mxu0 %v1129
        %v1148 = vpop.f32.mrf.mxu0
        %v1149 = vadd.f32 0.0, %v1148
        %1150 = vdwg.mxu0
        %1151 = vrot.lane.b32.xlu0 %v868, 64
        %v1152 = vpop.permute.xlu0 %1151
        %v1155 = vsel %vm874, %v1072, 0
        %1157 = vmatpush.msra.mxu0 0.0
        %1158 = vmatpush.msra.mxu0 0.0
        %1159 = vmatpush.msra.mxu0 0.0
        %1160 = vmatpush.msra.mxu0 0.0
        %1161 = vmatpush.msra.mxu0 0.0
        %1162 = vmatpush.msra.mxu0 0.0
        %1163 = vmatpush.msra.mxu0 0.0
        %1164 = vmatpush.msra.mxu0 0.0
        %1165 = vmatpush.msra.mxu0 0.0
        %1166 = vmatpush.msra.mxu0 0.0
        %1167 = vmatpush.msra.mxu0 0.0
        %1168 = vmatpush.msra.mxu0 0.0
        %1169 = vmatpush.msra.mxu0 0.0
        %1170 = vmatpush.msra.mxu0 0.0
        %1171 = vmatpush.msra.mxu0 0.0
        %1172 = vmatpush.msra.mxu0 %v1152
        %1173 = vmatmul.f32.gmra.mxu0 %v1155
        %v1174 = vpop.f32.mrf.mxu0
        %v1175 = vadd.f32 0.0, %v1174
        %1176 = vdwg.mxu0
        %1178 = vrot.lane.b32.xlu0 %v1123, 8
        %v1179 = vpop.permute.xlu0 %1178
        %1182 = vrot.lane.b32.xlu0 %v1149, 16
        %v1183 = vpop.permute.xlu0 %1182
        %1186 = vrot.lane.b32.xlu0 %v1175, 24
        %v1187 = vpop.permute.xlu0 %1186
        %v1189 = vsel %vm874, %v1097, %v1179
        %vm1190 = vcmask 130048
        %v1191 = vsel %vm1190, %v1189, %v1183
        %vm1192 = vcmask 195584
        %v1193 = vsel %vm1192, %v1191, %v1187
        %1195 = vrot.lane.b32.xlu0 %v852, 120
        %v1196 = vpop.permute.xlu0 %1195
        %1197 = vrot.lane.b32.xlu0 %v852, 112
        %v1198 = vpop.permute.xlu0 %1197
        %1199 = vrot.lane.b32.xlu0 %v852, 104
        %v1200 = vpop.permute.xlu0 %1199
        %1202 = vrot.lane.b32.xlu0 %v849, 120
        %v1203 = vpop.permute.xlu0 %1202
        %1204 = vrot.lane.b32.xlu0 %v849, 112
        %v1205 = vpop.permute.xlu0 %1204
        %1206 = vrot.lane.b32.xlu0 %v849, 104
        %v1207 = vpop.permute.xlu0 %1206
        %v1209 = vperm.slane %v854, 0
        %1211 = vrot.lane.b32.xlu0 %v849, 96
        %v1212 = vpop.permute.xlu0 %1211
        %v1213 = vsel %vm874, %v852, 0
        %v1215 = vsel %vm874, %v1212, 0
        %1217 = vmatpush.xpose.msra.mxu0 0.0
        %1218 = vmatpush.xpose.msra.mxu0 0.0
        %1219 = vmatpush.xpose.msra.mxu0 0.0
        %1220 = vmatpush.xpose.msra.mxu0 0.0
        %1221 = vmatpush.xpose.msra.mxu0 0.0
        %1222 = vmatpush.xpose.msra.mxu0 0.0
        %1223 = vmatpush.xpose.msra.mxu0 0.0
        %1224 = vmatpush.xpose.msra.mxu0 0.0
        %1225 = vmatpush.xpose.msra.mxu0 0.0
        %1226 = vmatpush.xpose.msra.mxu0 0.0
        %1227 = vmatpush.xpose.msra.mxu0 0.0
        %1228 = vmatpush.xpose.msra.mxu0 0.0
        %1229 = vmatpush.xpose.msra.mxu0 0.0
        %1230 = vmatpush.xpose.msra.mxu0 0.0
        %1231 = vmatpush.xpose.msra.mxu0 0.0
        %1232 = vmatpush.xpose.msra.mxu0 %v1215
        %1233 = vmatmul.f32.gmra.mxu0 %v1213
        %v1234 = vpop.f32.mrf.mxu0
        %v1235 = vadd.f32 %v1209, %v1234
        %1236 = vdwg.mxu0
        %1237 = vrot.lane.b32.xlu0 %v1203, 96
        %v1238 = vpop.permute.xlu0 %1237
        %v1239 = vsel %vm874, %v1196, 0
        %v1241 = vsel %vm874, %v1238, 0
        %1243 = vmatpush.xpose.msra.mxu0 0.0
        %1244 = vmatpush.xpose.msra.mxu0 0.0
        %1245 = vmatpush.xpose.msra.mxu0 0.0
        %1246 = vmatpush.xpose.msra.mxu0 0.0
        %1247 = vmatpush.xpose.msra.mxu0 0.0
        %1248 = vmatpush.xpose.msra.mxu0 0.0
        %1249 = vmatpush.xpose.msra.mxu0 0.0
        %1250 = vmatpush.xpose.msra.mxu0 0.0
        %1251 = vmatpush.xpose.msra.mxu0 0.0
        %1252 = vmatpush.xpose.msra.mxu0 0.0
        %1253 = vmatpush.xpose.msra.mxu0 0.0
        %1254 = vmatpush.xpose.msra.mxu0 0.0
        %1255 = vmatpush.xpose.msra.mxu0 0.0
        %1256 = vmatpush.xpose.msra.mxu0 0.0
        %1257 = vmatpush.xpose.msra.mxu0 0.0
        %1258 = vmatpush.xpose.msra.mxu0 %v1241
        %1259 = vmatmul.f32.gmra.mxu0 %v1239
        %v1260 = vpop.f32.mrf.mxu0
        %v1261 = vadd.f32 %v1209, %v1260
        %1262 = vdwg.mxu0
        %1263 = vrot.lane.b32.xlu0 %v1205, 96
        %v1264 = vpop.permute.xlu0 %1263
        %v1265 = vsel %vm874, %v1198, 0
        %v1267 = vsel %vm874, %v1264, 0
        %1269 = vmatpush.xpose.msra.mxu0 0.0
        %1270 = vmatpush.xpose.msra.mxu0 0.0
        %1271 = vmatpush.xpose.msra.mxu0 0.0
        %1272 = vmatpush.xpose.msra.mxu0 0.0
        %1273 = vmatpush.xpose.msra.mxu0 0.0
        %1274 = vmatpush.xpose.msra.mxu0 0.0
        %1275 = vmatpush.xpose.msra.mxu0 0.0
        %1276 = vmatpush.xpose.msra.mxu0 0.0
        %1277 = vmatpush.xpose.msra.mxu0 0.0
        %1278 = vmatpush.xpose.msra.mxu0 0.0
        %1279 = vmatpush.xpose.msra.mxu0 0.0
        %1280 = vmatpush.xpose.msra.mxu0 0.0
        %1281 = vmatpush.xpose.msra.mxu0 0.0
        %1282 = vmatpush.xpose.msra.mxu0 0.0
        %1283 = vmatpush.xpose.msra.mxu0 0.0
        %1284 = vmatpush.xpose.msra.mxu0 %v1267
        %1285 = vmatmul.f32.gmra.mxu0 %v1265
        %v1286 = vpop.f32.mrf.mxu0
        %v1287 = vadd.f32 %v1209, %v1286
        %1288 = vdwg.mxu0
        %1289 = vrot.lane.b32.xlu0 %v1207, 96
        %v1290 = vpop.permute.xlu0 %1289
        %v1291 = vsel %vm874, %v1200, 0
        %v1293 = vsel %vm874, %v1290, 0
        %1295 = vmatpush.xpose.msra.mxu0 0.0
        %1296 = vmatpush.xpose.msra.mxu0 0.0
        %1297 = vmatpush.xpose.msra.mxu0 0.0
        %1298 = vmatpush.xpose.msra.mxu0 0.0
        %1299 = vmatpush.xpose.msra.mxu0 0.0
        %1300 = vmatpush.xpose.msra.mxu0 0.0
        %1301 = vmatpush.xpose.msra.mxu0 0.0
        %1302 = vmatpush.xpose.msra.mxu0 0.0
        %1303 = vmatpush.xpose.msra.mxu0 0.0
        %1304 = vmatpush.xpose.msra.mxu0 0.0
        %1305 = vmatpush.xpose.msra.mxu0 0.0
        %1306 = vmatpush.xpose.msra.mxu0 0.0
        %1307 = vmatpush.xpose.msra.mxu0 0.0
        %1308 = vmatpush.xpose.msra.mxu0 0.0
        %1309 = vmatpush.xpose.msra.mxu0 0.0
        %1310 = vmatpush.xpose.msra.mxu0 %v1293
        %1311 = vmatmul.f32.gmra.mxu0 %v1291
        %v1312 = vpop.f32.mrf.mxu0
        %v1313 = vadd.f32 %v1209, %v1312
        %1314 = vdwg.mxu0
        %v1315 = vsel %vm874, %v1235, -inf
        %1316 = vmax.xlane.f32.xlu0 %v1315
        %v1317 = vpop.xlane.xlu0 %1316
        %v1318 = vsel %vm874, %v1261, -inf
        %1319 = vmax.xlane.f32.xlu0 %v1318
        %v1320 = vpop.xlane.xlu0 %1319
        %v1321 = vsel %vm874, %v1287, -inf
        %1322 = vmax.xlane.f32.xlu0 %v1321
        %v1323 = vpop.xlane.xlu0 %1322
        %v1324 = vsel %vm874, %v1313, -inf
        %1325 = vmax.xlane.f32.xlu0 %v1324
        %v1326 = vpop.xlane.xlu0 %1325
        %v1327 = vsub.f32 %v1235, %v1317
        %v1328 = vsub.f32 %v1261, %v1320
        %v1329 = vsub.f32 %v1287, %v1323
        %v1330 = vsub.f32 %v1313, %v1326
        %v1331 = vmul.f32 %v1327, 1.442695
        %v1332 = vpow.pop %v1331
        %v1333 = vmul.f32 %v1328, 1.442695
        %v1334 = vpow.pop %v1333
        %v1335 = vmul.f32 %v1329, 1.442695
        %v1336 = vpow.pop %v1335
        %v1337 = vmul.f32 %v1330, 1.442695
        %v1338 = vpow.pop %v1337
        %v1339 = vsel %vm874, %v1332, 0.0
        %1340 = vadd.xlane.f32.xlu0 %v1339
        %v1341 = vpop.xlane.xlu0 %1340
        %v1342 = vsel %vm874, %v1334, 0.0
        %1343 = vadd.xlane.f32.xlu0 %v1342
        %v1344 = vpop.xlane.xlu0 %1343
        %v1345 = vsel %vm874, %v1336, 0.0
        %1346 = vadd.xlane.f32.xlu0 %v1345
        %v1347 = vpop.xlane.xlu0 %1346
        %v1348 = vsel %vm874, %v1338, 0.0
        %1349 = vadd.xlane.f32.xlu0 %v1348
        %v1350 = vpop.xlane.xlu0 %1349
        %v1351 = vrcp.pop %v1341
        %v1352 = vmul.f32 %v1341, %v1351
        %v1353 = vsub.f32 1.0, %v1352
        %v1354 = vmul.f32 %v1351, %v1353
        %v1355 = vadd.f32 %v1351, %v1354
        %vm1356 = vweird.f32 %v1341
        %vm1357 = vweird.f32 %v1351
        %vm1358 = vmor %vm1356, %vm1357
        %v1359 = vsel %vm1358, %v1351, %v1355
        %v1360 = vand.u32 2147483647, %v1341
        %vm1361 = vcmp.eq.f32.partialorder %v1360, 8.507059e+37
        %v1362 = vand.u32 %v1341, 2147483648
        %v1363 = vor.u32 1.1754944e-38, %v1362
        %v1364 = vsel %vm1361, %v1363, %v1359
        %v1365 = vmul.f32 %v1332, %v1364
        %v1366 = vrcp.pop %v1344
        %v1367 = vmul.f32 %v1344, %v1366
        %v1368 = vsub.f32 1.0, %v1367
        %v1369 = vmul.f32 %v1366, %v1368
        %v1370 = vadd.f32 %v1366, %v1369
        %vm1371 = vweird.f32 %v1344
        %vm1372 = vweird.f32 %v1366
        %vm1373 = vmor %vm1371, %vm1372
        %v1374 = vsel %vm1373, %v1366, %v1370
        %v1375 = vand.u32 2147483647, %v1344
        %vm1376 = vcmp.eq.f32.partialorder %v1375, 8.507059e+37
        %v1377 = vand.u32 %v1344, 2147483648
        %v1378 = vor.u32 1.1754944e-38, %v1377
        %v1379 = vsel %vm1376, %v1378, %v1374
        %v1380 = vmul.f32 %v1334, %v1379
        %v1381 = vrcp.pop %v1347
        %v1382 = vmul.f32 %v1347, %v1381
        %v1383 = vsub.f32 1.0, %v1382
        %v1384 = vmul.f32 %v1381, %v1383
        %v1385 = vadd.f32 %v1381, %v1384
        %vm1386 = vweird.f32 %v1347
        %vm1387 = vweird.f32 %v1381
        %vm1388 = vmor %vm1386, %vm1387
        %v1389 = vsel %vm1388, %v1381, %v1385
        %v1390 = vand.u32 2147483647, %v1347
        %vm1391 = vcmp.eq.f32.partialorder %v1390, 8.507059e+37
        %v1392 = vand.u32 %v1347, 2147483648
        %v1393 = vor.u32 1.1754944e-38, %v1392
        %v1394 = vsel %vm1391, %v1393, %v1389
        %v1395 = vmul.f32 %v1336, %v1394
        %v1396 = vrcp.pop %v1350
        %v1397 = vmul.f32 %v1350, %v1396
        %v1398 = vsub.f32 1.0, %v1397
        %v1399 = vmul.f32 %v1396, %v1398
        %v1400 = vadd.f32 %v1396, %v1399
        %vm1401 = vweird.f32 %v1350
        %vm1402 = vweird.f32 %v1396
        %vm1403 = vmor %vm1401, %vm1402
        %v1404 = vsel %vm1403, %v1396, %v1400
        %v1405 = vand.u32 2147483647, %v1350
        %vm1406 = vcmp.eq.f32.partialorder %v1405, 8.507059e+37
        %v1407 = vand.u32 %v1350, 2147483648
        %v1408 = vor.u32 1.1754944e-38, %v1407
        %v1409 = vsel %vm1406, %v1408, %v1404
        %v1410 = vmul.f32 %v1338, %v1409
        %1411 = vrot.lane.b32.xlu0 %v849, 64
        %v1412 = vpop.permute.xlu0 %1411
        %v1415 = vsel %vm874, %v1365, 0
        %1417 = vmatpush.msra.mxu0 0.0
        %1418 = vmatpush.msra.mxu0 0.0
        %1419 = vmatpush.msra.mxu0 0.0
        %1420 = vmatpush.msra.mxu0 0.0
        %1421 = vmatpush.msra.mxu0 0.0
        %1422 = vmatpush.msra.mxu0 0.0
        %1423 = vmatpush.msra.mxu0 0.0
        %1424 = vmatpush.msra.mxu0 0.0
        %1425 = vmatpush.msra.mxu0 0.0
        %1426 = vmatpush.msra.mxu0 0.0
        %1427 = vmatpush.msra.mxu0 0.0
        %1428 = vmatpush.msra.mxu0 0.0
        %1429 = vmatpush.msra.mxu0 0.0
        %1430 = vmatpush.msra.mxu0 0.0
        %1431 = vmatpush.msra.mxu0 0.0
        %1432 = vmatpush.msra.mxu0 %v1412
        %1433 = vmatmul.f32.gmra.mxu0 %v1415
        %v1434 = vpop.f32.mrf.mxu0
        %v1435 = vadd.f32 0.0, %v1434
        %1436 = vdwg.mxu0
        %1437 = vrot.lane.b32.xlu0 %v1203, 64
        %v1438 = vpop.permute.xlu0 %1437
        %v1441 = vsel %vm874, %v1380, 0
        %1443 = vmatpush.msra.mxu0 0.0
        %1444 = vmatpush.msra.mxu0 0.0
        %1445 = vmatpush.msra.mxu0 0.0
        %1446 = vmatpush.msra.mxu0 0.0
        %1447 = vmatpush.msra.mxu0 0.0
        %1448 = vmatpush.msra.mxu0 0.0
        %1449 = vmatpush.msra.mxu0 0.0
        %1450 = vmatpush.msra.mxu0 0.0
        %1451 = vmatpush.msra.mxu0 0.0
        %1452 = vmatpush.msra.mxu0 0.0
        %1453 = vmatpush.msra.mxu0 0.0
        %1454 = vmatpush.msra.mxu0 0.0
        %1455 = vmatpush.msra.mxu0 0.0
        %1456 = vmatpush.msra.mxu0 0.0
        %1457 = vmatpush.msra.mxu0 0.0
        %1458 = vmatpush.msra.mxu0 %v1438
        %1459 = vmatmul.f32.gmra.mxu0 %v1441
        %v1460 = vpop.f32.mrf.mxu0
        %v1461 = vadd.f32 0.0, %v1460
        %1462 = vdwg.mxu0
        %1463 = vrot.lane.b32.xlu0 %v1205, 64
        %v1464 = vpop.permute.xlu0 %1463
        %v1467 = vsel %vm874, %v1395, 0
        %1469 = vmatpush.msra.mxu0 0.0
        %1470 = vmatpush.msra.mxu0 0.0
        %1471 = vmatpush.msra.mxu0 0.0
        %1472 = vmatpush.msra.mxu0 0.0
        %1473 = vmatpush.msra.mxu0 0.0
        %1474 = vmatpush.msra.mxu0 0.0
        %1475 = vmatpush.msra.mxu0 0.0
        %1476 = vmatpush.msra.mxu0 0.0
        %1477 = vmatpush.msra.mxu0 0.0
        %1478 = vmatpush.msra.mxu0 0.0
        %1479 = vmatpush.msra.mxu0 0.0
        %1480 = vmatpush.msra.mxu0 0.0
        %1481 = vmatpush.msra.mxu0 0.0
        %1482 = vmatpush.msra.mxu0 0.0
        %1483 = vmatpush.msra.mxu0 0.0
        %1484 = vmatpush.msra.mxu0 %v1464
        %1485 = vmatmul.f32.gmra.mxu0 %v1467
        %v1486 = vpop.f32.mrf.mxu0
        %v1487 = vadd.f32 0.0, %v1486
        %1488 = vdwg.mxu0
        %1489 = vrot.lane.b32.xlu0 %v1207, 64
        %v1490 = vpop.permute.xlu0 %1489
        %v1493 = vsel %vm874, %v1410, 0
        %1495 = vmatpush.msra.mxu0 0.0
        %1496 = vmatpush.msra.mxu0 0.0
        %1497 = vmatpush.msra.mxu0 0.0
        %1498 = vmatpush.msra.mxu0 0.0
        %1499 = vmatpush.msra.mxu0 0.0
        %1500 = vmatpush.msra.mxu0 0.0
        %1501 = vmatpush.msra.mxu0 0.0
        %1502 = vmatpush.msra.mxu0 0.0
        %1503 = vmatpush.msra.mxu0 0.0
        %1504 = vmatpush.msra.mxu0 0.0
        %1505 = vmatpush.msra.mxu0 0.0
        %1506 = vmatpush.msra.mxu0 0.0
        %1507 = vmatpush.msra.mxu0 0.0
        %1508 = vmatpush.msra.mxu0 0.0
        %1509 = vmatpush.msra.mxu0 0.0
        %1510 = vmatpush.msra.mxu0 %v1490
        %1511 = vmatmul.f32.gmra.mxu0 %v1493
        %v1512 = vpop.f32.mrf.mxu0
        %v1513 = vadd.f32 0.0, %v1512
        %1514 = vdwg.mxu0
        %1516 = vrot.lane.b32.xlu0 %v1461, 8
        %v1517 = vpop.permute.xlu0 %1516
        %1520 = vrot.lane.b32.xlu0 %v1487, 16
        %v1521 = vpop.permute.xlu0 %1520
        %1524 = vrot.lane.b32.xlu0 %v1513, 24
        %v1525 = vpop.permute.xlu0 %1524
        %v1527 = vsel %vm874, %v1435, %v1517
        %v1528 = vsel %vm1190, %v1527, %v1521
        %v1529 = vsel %vm1192, %v1528, %v1525
        %v1530 = vld [vmem:[%s706] sm:$0xff]
        %v1531 = vld [vmem:[%s706 + $0x8] sm:$0xff]
        %v1532 = vld [vmem:[%s706 + $0x10] sm:$0xff]
        %v1533 = vld [vmem:[%s706 + $0x18] sm:$0xff]
        %v1534 = vld [vmem:[%s709] sm:$0x1]
        %v1536 = vperm.slane %v1534, 0
        %v1539 = vsel %vm821, %v1193, 0
        %v1542 = vsel %vm821, %v1529, 0
        %1544 = vmatpush.msra.mxu0 0.0
        %1545 = vmatpush.msra.mxu0 0.0
        %1546 = vmatpush.msra.mxu0 0.0
        %1547 = vmatpush.msra.mxu0 0.0
        %1548 = vmatpush.msra.mxu0 0.0
        %1549 = vmatpush.msra.mxu0 0.0
        %1550 = vmatpush.msra.mxu0 0.0
        %1551 = vmatpush.msra.mxu0 0.0
        %1552 = vmatpush.msra.mxu0 0.0
        %1553 = vmatpush.msra.mxu0 0.0
        %1554 = vmatpush.msra.mxu0 0.0
        %1555 = vmatpush.msra.mxu0 0.0
        %1556 = vmatpush.msra.mxu0 %v1533
        %1557 = vmatpush.msra.mxu0 %v1532
        %1558 = vmatpush.msra.mxu0 %v1531
        %1559 = vmatpush.msra.mxu0 %v1530
        %1560 = vmatmul.f32.gmra.mxu0 %v1539
        %v1561 = vpop.f32.mrf.mxu0
        %v1562 = vadd.f32 %v1536, %v1561
        %1563 = vmatmul.f32.gmra.mxu0 %v1542
        %v1564 = vpop.f32.mrf.mxu0
        %v1565 = vadd.f32 %v1536, %v1564
        %1566 = vdwg.mxu0
        %v1567 = vadd.f32 %v811, %v1562
        %v1568 = vadd.f32 %v812, %v1565
        %v1569 = vld [vmem:[%s712] sm:$0x1]
        %v1570 = vld [vmem:[%s715] sm:$0x1]
        %v1571 = vsel %vm821, %v1567, 0.0
        %1572 = vadd.xlane.f32.xlu0 %v1571
        %v1573 = vpop.xlane.xlu0 %1572
        %v1574 = vsel %vm821, %v1568, 0.0
        %1575 = vadd.xlane.f32.xlu0 %v1574
        %v1576 = vpop.xlane.xlu0 %1575
        %v1577 = vrcp.pop 32.0
        %v1578 = vmul.f32 32.0, %v1577
        %v1579 = vsub.f32 1.0, %v1578
        %v1580 = vmul.f32 %v1577, %v1579
        %v1581 = vadd.f32 %v1577, %v1580
        %vm1582 = vweird.f32 %v1577
        %v1583 = vsel %vm1582, %v1577, %v1581
        %v1584 = vmul.f32 %v1573, %v1583
        %v1585 = vmul.f32 %v1576, %v1583
        %v1586 = vsub.f32 %v1567, %v1584
        %v1587 = vsub.f32 %v1568, %v1585
        %v1588 = vmul.f32 %v1586, %v1586
        %v1589 = vmul.f32 %v1587, %v1587
        %v1590 = vsel %vm821, %v1588, 0.0
        %1591 = vadd.xlane.f32.xlu0 %v1590
        %v1592 = vpop.xlane.xlu0 %1591
        %v1593 = vsel %vm821, %v1589, 0.0
        %1594 = vadd.xlane.f32.xlu0 %v1593
        %v1595 = vpop.xlane.xlu0 %1594
        %v1596 = vmul.f32 %v1592, %v1583
        %v1597 = vmul.f32 %v1595, %v1583
        %v1598 = vadd.f32 %v1596, 1e-12
        %v1599 = vadd.f32 %v1597, 1e-12
        %v1600 = vrsqrt.pop %v1598
        %v1601 = vmul.f32 %v1600, %v1598
        %v1602 = vmul.f32 %v1601, %v1600
        %v1603 = vmul.f32 0.5, %v1602
        %v1604 = vsub.f32 1.5, %v1603
        %v1605 = vmul.f32 %v1600, %v1604
        %vm1606 = vweird.f32 %v1598
        %vm1607 = vweird.f32 %v1600
        %vm1608 = vmor %vm1606, %vm1607
        %v1609 = vsel %vm1608, %v1600, %v1605
        %v1610 = vrsqrt.pop %v1599
        %v1611 = vmul.f32 %v1610, %v1599
        %v1612 = vmul.f32 %v1611, %v1610
        %v1613 = vmul.f32 0.5, %v1612
        %v1614 = vsub.f32 1.5, %v1613
        %v1615 = vmul.f32 %v1610, %v1614
        %vm1616 = vweird.f32 %v1599
        %vm1617 = vweird.f32 %v1610
        %vm1618 = vmor %vm1616, %vm1617
        %v1619 = vsel %vm1618, %v1610, %v1615
        %v1620 = vmul.f32 %v1586, %v1609
        %v1621 = vmul.f32 %v1587, %v1619
        %v1623 = vperm.slane %v1569, 0
        %v1625 = vmul.f32 %v1623, %v1620
        %v1626 = vmul.f32 %v1623, %v1621
        %v1628 = vperm.slane %v1570, 0
        %v1630 = vadd.f32 %v1625, %v1628
        %v1631 = vadd.f32 %v1626, %v1628
        %v1632 = vld [vmem:[%s720] sm:$0xff]
        %v1633 = vld [vmem:[%s720 + $0x8] sm:$0xff]
        %v1634 = vld [vmem:[%s720 + $0x10] sm:$0xff]
        %v1635 = vld [vmem:[%s720 + $0x18] sm:$0xff]
        %v1636 = vld [vmem:[%s723] sm:$0x1]
        %v1638 = vperm.slane %v1636, 0
        %v1641 = vsel %vm821, %v1630, 0
        %v1644 = vsel %vm821, %v1631, 0
        %1646 = vmatpush.msra.mxu0 0.0
        %1647 = vmatpush.msra.mxu0 0.0
        %1648 = vmatpush.msra.mxu0 0.0
        %1649 = vmatpush.msra.mxu0 0.0
        %1650 = vmatpush.msra.mxu0 0.0
        %1651 = vmatpush.msra.mxu0 0.0
        %1652 = vmatpush.msra.mxu0 0.0
        %1653 = vmatpush.msra.mxu0 0.0
        %1654 = vmatpush.msra.mxu0 0.0
        %1655 = vmatpush.msra.mxu0 0.0
        %1656 = vmatpush.msra.mxu0 0.0
        %1657 = vmatpush.msra.mxu0 0.0
        %1658 = vmatpush.msra.mxu0 %v1635
        %1659 = vmatpush.msra.mxu0 %v1634
        %1660 = vmatpush.msra.mxu0 %v1633
        %1661 = vmatpush.msra.mxu0 %v1632
        %1662 = vmatmul.f32.gmra.mxu0 %v1641
        %v1663 = vpop.f32.mrf.mxu0
        %v1664 = vadd.f32 %v1638, %v1663
        %1665 = vmatmul.f32.gmra.mxu0 %v1644
        %v1666 = vpop.f32.mrf.mxu0
        %v1667 = vadd.f32 %v1638, %v1666
        %1668 = vdwg.mxu0
        %v1669 = vmul.f32 %v1664, 0.5
        %v1670 = vmul.f32 %v1667, 0.5
        %v1671 = vrcp.pop 1.4142135
        %v1672 = vmul.f32 1.4142135, %v1671
        %v1673 = vsub.f32 1.0, %v1672
        %v1674 = vmul.f32 %v1671, %v1673
        %v1675 = vadd.f32 %v1671, %v1674
        %vm1676 = vweird.f32 %v1671
        %v1677 = vsel %vm1676, %v1671, %v1675
        %v1678 = vmul.f32 %v1664, %v1677
        %v1679 = vmul.f32 %v1667, %v1677
        %v1680 = vmul.f32 %v1678, %v1678
        %v1681 = vmin.f32 16.0, %v1680
        %v1682 = vmul.f32 %v1681, 2.1237322e-06
        %v1683 = vadd.f32 %v1682, 0.00028619796
        %v1684 = vmul.f32 %v1681, %v1683
        %v1685 = vadd.f32 %v1684, 0.0036580483
        %v1686 = vmul.f32 %v1681, %v1685
        %v1687 = vadd.f32 %v1686, 0.05243302
        %v1688 = vmul.f32 %v1681, %v1687
        %v1689 = vadd.f32 %v1688, 0.18741608
        %v1690 = vmul.f32 %v1681, %v1689
        %v1691 = vadd.f32 %v1690, 1.1283791
        %v1692 = vmul.f32 %v1678, %v1691
        %v1693 = vmul.f32 %v1681, 3.8918573e-05
        %v1694 = vadd.f32 %v1693, 0.001143296
        %v1695 = vmul.f32 %v1681, %v1694
        %v1696 = vadd.f32 %v1695, 0.014752088
        %v1697 = vmul.f32 %v1681, %v1696
        %v1698 = vadd.f32 %v1697, 0.112945676
        %v1699 = vmul.f32 %v1681, %v1698
        %v1700 = vadd.f32 %v1699, 0.4994258
        %v1701 = vmul.f32 %v1681, %v1700
        %v1702 = vadd.f32 %v1701, 1.0
        %v1703 = vrcp.pop %v1702
        %v1704 = vmul.f32 %v1702, %v1703
        %v1705 = vsub.f32 1.0, %v1704
        %v1706 = vmul.f32 %v1703, %v1705
        %v1707 = vadd.f32 %v1703, %v1706
        %vm1708 = vweird.f32 %v1702
        %vm1709 = vweird.f32 %v1703
        %vm1710 = vmor %vm1708, %vm1709
        %v1711 = vsel %vm1710, %v1703, %v1707
        %v1712 = vand.u32 2147483647, %v1702
        %vm1713 = vcmp.eq.f32.partialorder %v1712, 8.507059e+37
        %v1714 = vand.u32 %v1702, 2147483648
        %v1715 = vor.u32 1.1754944e-38, %v1714
        %v1716 = vsel %vm1713, %v1715, %v1711
        %v1717 = vmul.f32 %v1692, %v1716
        %v1718 = vmin.f32 %v1717, 1.0
        %v1719 = vmax.f32 %v1718, -1.0
        %v1720 = vmul.f32 %v1679, %v1679
        %v1721 = vmin.f32 16.0, %v1720
        %v1722 = vmul.f32 %v1721, 2.1237322e-06
        %v1723 = vadd.f32 %v1722, 0.00028619796
        %v1724 = vmul.f32 %v1721, %v1723
        %v1725 = vadd.f32 %v1724, 0.0036580483
        %v1726 = vmul.f32 %v1721, %v1725
        %v1727 = vadd.f32 %v1726, 0.05243302
        %v1728 = vmul.f32 %v1721, %v1727
        %v1729 = vadd.f32 %v1728, 0.18741608
        %v1730 = vmul.f32 %v1721, %v1729
        %v1731 = vadd.f32 %v1730, 1.1283791
        %v1732 = vmul.f32 %v1679, %v1731
        %v1733 = vmul.f32 %v1721, 3.8918573e-05
        %v1734 = vadd.f32 %v1733, 0.001143296
        %v1735 = vmul.f32 %v1721, %v1734
        %v1736 = vadd.f32 %v1735, 0.014752088
        %v1737 = vmul.f32 %v1721, %v1736
        %v1738 = vadd.f32 %v1737, 0.112945676
        %v1739 = vmul.f32 %v1721, %v1738
        %v1740 = vadd.f32 %v1739, 0.4994258
        %v1741 = vmul.f32 %v1721, %v1740
        %v1742 = vadd.f32 %v1741, 1.0
        %v1743 = vrcp.pop %v1742
        %v1744 = vmul.f32 %v1742, %v1743
        %v1745 = vsub.f32 1.0, %v1744
        %v1746 = vmul.f32 %v1743, %v1745
        %v1747 = vadd.f32 %v1743, %v1746
        %vm1748 = vweird.f32 %v1742
        %vm1749 = vweird.f32 %v1743
        %vm1750 = vmor %vm1748, %vm1749
        %v1751 = vsel %vm1750, %v1743, %v1747
        %v1752 = vand.u32 2147483647, %v1742
        %vm1753 = vcmp.eq.f32.partialorder %v1752, 8.507059e+37
        %v1754 = vand.u32 %v1742, 2147483648
        %v1755 = vor.u32 1.1754944e-38, %v1754
        %v1756 = vsel %vm1753, %v1755, %v1751
        %v1757 = vmul.f32 %v1732, %v1756
        %v1758 = vmin.f32 %v1757, 1.0
        %v1759 = vmax.f32 %v1758, -1.0
        %v1760 = vadd.f32 %v1719, 1.0
        %v1761 = vadd.f32 %v1759, 1.0
        %v1762 = vmul.f32 %v1669, %v1760
        %v1763 = vmul.f32 %v1670, %v1761
        %v1764 = vld [vmem:[%s728] sm:$0xff]
        %v1765 = vld [vmem:[%s728 + $0x8] sm:$0xff]
        %v1766 = vld [vmem:[%s728 + $0x10] sm:$0xff]
        %v1767 = vld [vmem:[%s728 + $0x18] sm:$0xff]
        %v1768 = vld [vmem:[%s728 + $0x20] sm:$0xff]
        %v1769 = vld [vmem:[%s728 + $0x28] sm:$0xff]
        %v1770 = vld [vmem:[%s728 + $0x30] sm:$0xff]
        %v1771 = vld [vmem:[%s728 + $0x38] sm:$0xff]
        %v1772 = vld [vmem:[%s728 + $0x40] sm:$0xff]
        %v1773 = vld [vmem:[%s728 + $0x48] sm:$0xff]
        %v1774 = vld [vmem:[%s728 + $0x50] sm:$0xff]
        %v1775 = vld [vmem:[%s728 + $0x58] sm:$0xff]
        %v1776 = vld [vmem:[%s728 + $0x60] sm:$0xff]
        %v1777 = vld [vmem:[%s728 + $0x68] sm:$0xff]
        %v1778 = vld [vmem:[%s728 + $0x70] sm:$0xff]
        %v1779 = vld [vmem:[%s728 + $0x78] sm:$0xff]
        %v1780 = vld [vmem:[%s731] sm:$0x1]
        %v1782 = vperm.slane %v1780, 0
        %1784 = vmatpush.msra.mxu0 %v1779
        %1785 = vmatpush.msra.mxu0 %v1778
        %1786 = vmatpush.msra.mxu0 %v1777
        %1787 = vmatpush.msra.mxu0 %v1776
        %1788 = vmatpush.msra.mxu0 %v1775
        %1789 = vmatpush.msra.mxu0 %v1774
        %1790 = vmatpush.msra.mxu0 %v1773
        %1791 = vmatpush.msra.mxu0 %v1772
        %1792 = vmatpush.msra.mxu0 %v1771
        %1793 = vmatpush.msra.mxu0 %v1770
        %1794 = vmatpush.msra.mxu0 %v1769
        %1795 = vmatpush.msra.mxu0 %v1768
        %1796 = vmatpush.msra.mxu0 %v1767
        %1797 = vmatpush.msra.mxu0 %v1766
        %1798 = vmatpush.msra.mxu0 %v1765
        %1799 = vmatpush.msra.mxu0 %v1764
        %1800 = vmatmul.f32.gmra.mxu0 %v1762
        %v1801 = vpop.f32.mrf.mxu0
        %v1802 = vadd.f32 %v1782, %v1801
        %1803 = vmatmul.f32.gmra.mxu0 %v1763
        %v1804 = vpop.f32.mrf.mxu0
        %v1805 = vadd.f32 %v1782, %v1804
        %1806 = vdwg.mxu0
        %v1807 = vadd.f32 %v1630, %v1802
        %v1808 = vadd.f32 %v1631, %v1805
        %v1809 = vld [vmem:[%s734] sm:$0x1]
        %v1810 = vld [vmem:[%s737] sm:$0x1]
        %v1811 = vsel %vm821, %v1807, 0.0
        %1812 = vadd.xlane.f32.xlu0 %v1811
        %v1813 = vpop.xlane.xlu0 %1812
        %v1814 = vsel %vm821, %v1808, 0.0
        %1815 = vadd.xlane.f32.xlu0 %v1814
        %v1816 = vpop.xlane.xlu0 %1815
        %v1817 = vmul.f32 %v1813, %v1583
        %v1818 = vmul.f32 %v1816, %v1583
        %v1819 = vsub.f32 %v1807, %v1817
        %v1820 = vsub.f32 %v1808, %v1818
        %v1821 = vmul.f32 %v1819, %v1819
        %v1822 = vmul.f32 %v1820, %v1820
        %v1823 = vsel %vm821, %v1821, 0.0
        %1824 = vadd.xlane.f32.xlu0 %v1823
        %v1825 = vpop.xlane.xlu0 %1824
        %v1826 = vsel %vm821, %v1822, 0.0
        %1827 = vadd.xlane.f32.xlu0 %v1826
        %v1828 = vpop.xlane.xlu0 %1827
        %v1829 = vmul.f32 %v1825, %v1583
        %v1830 = vmul.f32 %v1828, %v1583
        %v1831 = vadd.f32 %v1829, 1e-12
        %v1832 = vadd.f32 %v1830, 1e-12
        %v1833 = vrsqrt.pop %v1831
        %v1834 = vmul.f32 %v1833, %v1831
        %v1835 = vmul.f32 %v1834, %v1833
        %v1836 = vmul.f32 0.5, %v1835
        %v1837 = vsub.f32 1.5, %v1836
        %v1838 = vmul.f32 %v1833, %v1837
        %vm1839 = vweird.f32 %v1831
        %vm1840 = vweird.f32 %v1833
        %vm1841 = vmor %vm1839, %vm1840
        %v1842 = vsel %vm1841, %v1833, %v1838
        %v1843 = vrsqrt.pop %v1832
        %v1844 = vmul.f32 %v1843, %v1832
        %v1845 = vmul.f32 %v1844, %v1843
        %v1846 = vmul.f32 0.5, %v1845
        %v1847 = vsub.f32 1.5, %v1846
        %v1848 = vmul.f32 %v1843, %v1847
        %vm1849 = vweird.f32 %v1832
        %vm1850 = vweird.f32 %v1843
        %vm1851 = vmor %vm1849, %vm1850
        %v1852 = vsel %vm1851, %v1843, %v1848
        %v1853 = vmul.f32 %v1819, %v1842
        %v1854 = vmul.f32 %v1820, %v1852
        %v1856 = vperm.slane %v1809, 0
        %v1858 = vmul.f32 %v1856, %v1853
        %v1859 = vmul.f32 %v1856, %v1854
        %v1861 = vperm.slane %v1810, 0
        %v1863 = vadd.f32 %v1858, %v1861
        %v1864 = vadd.f32 %v1859, %v1861
        %1865 = vst.msk [vmem:[#allocation2] sm:$0xff] %vm821, %v1863
        %1866 = vst.msk [vmem:[#allocation2 + $0x8] sm:$0xff] %vm821, %v1864
        %p1867 = scmp.eq.s32.totalorder %s33, 1
        // Predicated region
        $region89: #{encoder_stack_forward.1} parent=83 // pred_check
          %p1868 = pneg %p1867
        $region90: #{encoder_stack_forward.1} parent=83 // pred_check_branch
          %1870 = sbr.rel (%p1868) target = $region92
        $region91: #{encoder_stack_forward.1} parent=83 // pred_region
          %1871 = vst.msk [vmem:[#allocation3] sm:$0xff] %vm821, %v1863
          %1872 = vst.msk [vmem:[#allocation3 + $0x8] sm:$0xff] %vm821, %v1864
        $region92: #{encoder_stack_forward.1} parent=83 // pred_fallthru
          _
        // Predicated region
        $region93: #{encoder_stack_forward.1} parent=83 // pred_check
          %p1873 = pneg %p464
        $region94: #{encoder_stack_forward.1} parent=83 // pred_check_branch
          %1875 = sbr.rel (%p1873) target = $region96
        $region95: #{encoder_stack_forward.1} parent=83 // pred_region
          %s1876 = smul.u32 2, %s32
          %1878 = vsyncadd [#allocation4], 0
          %s1879 = smul.addr %s1876, 8
          %s1880 = scalar_lea.hbm %s16, %s1879
          %s1881 = sshll.u32 [#allocation3], 4
          %s1882 = int_to_ptr.vmem [resolvable:$true] %s1881
          %s1883 = sshll.u32 %s1880, 4
          %s1884 = int_to_ptr.hbm [resolvable:$true] %s1883
          %1889 = dma.vmem_to_hbm [thread:$0]  %s1882, 256, %s1884, [#allocation4], 128, 128, 8
        $region96: #{encoder_stack_forward.1} parent=83 // pred_fallthru
          _
        // Predicated region
        $region97: #{encoder_stack_forward.1} parent=83 // pred_check
          %p1890 = pneg %p464
        $region98: #{encoder_stack_forward.1} parent=83 // pred_check_branch
          %1892 = sbr.rel (%p1890) target = $region100
        $region99: #{encoder_stack_forward.1} parent=83 // pred_region
          %1894 = dma.done [#allocation4], 256
        $region100: #{encoder_stack_forward.1} parent=83 // pred_fallthru
          _
      $region84: #{encoder_stack_forward.1} parent=5 // pred_fallthru
        _
      %p1895 = scmp.le.s32.totalorder 2, %s23
      // Predicated region
      $region101: #{encoder_stack_forward.1} parent=5 // pred_check
        %p1896 = pneg %p1895
      $region102: #{encoder_stack_forward.1} parent=5 // pred_check_branch
        %1898 = sbr.rel (%p1896) target = $region104
      $region103: #{encoder_stack_forward.1} parent=5 // pred_region
        %s1899 = ssub.s32 %s23, 2
      $region104: #{encoder_stack_forward.1} parent=5 // pred_fallthru
        _
    $region6: #{encoder_stack_forward.1} parent=1 // loop_footer
      %s27 = sadd.s32 1, %s23
    $region7: #{encoder_stack_forward.1} parent=1 // loop_footer_branch
      %22 = sbr.rel target = $region3
    $region8: #{encoder_stack_forward.1} parent=1 // loop_exit
      _
    %1900 = vsyncpa [#allocation4], 1
    %s1901 = scalar_lea.sflag [#allocation4], 1
    %1902 = vsyncpa %s1901, 1

</llo_original>
